<compile_context>
chip_gen: v7x
topology: tpu7x:2x2x1
jax: 0.10.0
libtpu: 0.0.40
codegen_flags: <defaults>
</compile_context>

<pallas_src>
import functools

import jax
import jax.numpy as jnp
from jax.experimental import pallas as pl
from jax.experimental.pallas import tpu as pltpu


def dual_conv_kernel(xw_ref, w1_ref, b1_ref, w2_ref, b2_ref, o_ref, *,
                     kernel_size, tile_t, n_base, activation):
    # xw_ref : [1, 1, C+1, W] bf16 -- rows 0..C-1 = x window, row C = 0/1 mask.
    #          W = tile_t + 4p (2p halo each side), zero padded at seq edges.
    # w1_ref : [K, H, C] bf16   b1_ref : [H, 1] f32
    # w2_ref : [K, C, H] bf16   b2_ref : [C, 1] f32
    # o_ref  : [1, C, tile_t]
    K = kernel_size
    p = K // 2
    th = tile_t + 2 * p          # conv_1 output width (keeps p halo each side)

    win = xw_ref[0, 0]                              # [C+1, W] bf16
    x_rows = win[:n_base, :]                        # [C, W]
    m_row = win[n_base:n_base + 1, :]               # [1, W] 0/1 mask

    # x * mask in bf16 (exact, since the mask is exactly 0 or 1).
    xm = x_rows * m_row                             # [C, W] bf16

    # ---- conv_1: K unrolled accumulating matmuls (tap k shifts the window).
    # TODO(synk): at very large C/H a DMA-built im2col + single matmul could
    # trade VPU adds for MXU cadence; not worth it at these channel counts.
    h = jnp.dot(w1_ref[0], xm[:, 0:th], preferred_element_type=jnp.float32)
    for k in range(1, K):
        h = h + jnp.dot(w1_ref[k], xm[:, k:k + th],
                        preferred_element_type=jnp.float32)
    h = h + b1_ref[...]                             # [H, th] f32

    # ---- activation (module default activation=None -> relu).
    if activation == "gelu":
        h = h * jax.nn.sigmoid(1.702 * h)
    else:
        h = jnp.maximum(h, 0.0)
    # TODO(synk): nn.Dropout is identity here (inference / p_dropout == 0).

    # ---- conv_2 on re-masked hidden activations (same shifted-matmul trick).
    hm = h.astype(jnp.bfloat16) * m_row[:, p:p + th]      # [H, th] bf16
    y = jnp.dot(w2_ref[0], hm[:, 0:tile_t], preferred_element_type=jnp.float32)
    for k in range(1, K):
        y = y + jnp.dot(w2_ref[k], hm[:, k:k + tile_t],
                        preferred_element_type=jnp.float32)
    y = y + b2_ref[...]                             # [C, tile_t] f32

    m_out = m_row[:, 2 * p:2 * p + tile_t].astype(jnp.float32)
    o_ref[0] = (y * m_out).astype(o_ref.dtype)


def dual_conv(x, x_mask, w1, b1, w2, b2, *, kernel_size, activation=None,
              tile_t=512, out_dtype=None):
    """PyTorch DualConv forward.

    x      : [B, base_channels, T]   (NCT, like the torch module)
    x_mask : [B, 1, T]               0/1 mask
    w1     : [hidden, base, K],  b1 : [hidden]   (torch nn.Conv1d layout)
    w2     : [base, hidden, K],  b2 : [base]
    Returns [B, base_channels, T].
    """
    B, C, T = x.shape
    K = kernel_size
    assert K % 2 == 1, "even kernel_size changes 'same'-padding output length"
    p = K // 2
    H, c_in, kw = w1.shape
    assert c_in == C and kw == K and w2.shape == (C, H, K)
    out_dtype = x.dtype if out_dtype is None else out_dtype  # bf16 halves writeback if ok

    # Lane-dense time tile (multiple of 128), clamped to the sequence length.
    tile_t = max(128, (tile_t // 128) * 128)
    tile_t = min(tile_t, ((T + 127) // 128) * 128)
    nt = -(-T // tile_t)
    t_core = nt * tile_t
    w_win = tile_t + 4 * p

    # Fuse the mask as channel row C; zero-pad time to [2p | t_core | 2p]
    # (the tail padding keeps the mask zero beyond T, so the last tile is
    # valid); pre-halo into per-tile overlapping windows so a plain BlockSpec
    # auto-pipelines the HBM->VMEM copies.
    xm = jnp.concatenate([x, x_mask.astype(x.dtype)], axis=1)       # [B, C+1, T]
    xp = jnp.pad(xm.astype(jnp.bfloat16),
                 ((0, 0), (0, 0), (2 * p, (t_core - T) + 2 * p)))
    xw = jnp.stack(
        [xp[:, :, i * tile_t:i * tile_t + w_win] for i in range(nt)],
        axis=1)                                                     # [B, nt, C+1, W]

    # Torch [C_out, C_in, K] -> tap-major [K, C_out, C_in] (stays VMEM-resident).
    w1t = jnp.transpose(w1, (2, 0, 1)).astype(jnp.bfloat16)         # [K, H, C]
    w2t = jnp.transpose(w2, (2, 0, 1)).astype(jnp.bfloat16)         # [K, C, H]
    b1c = b1.reshape(H, 1).astype(jnp.float32)
    b2c = b2.reshape(C, 1).astype(jnp.float32)

    kernel = functools.partial(dual_conv_kernel, kernel_size=K, tile_t=tile_t,
                               n_base=C, activation=activation)

    return pl.pallas_call(
        kernel,
        out_shape=jax.ShapeDtypeStruct((B, C, T), out_dtype),
        grid_spec=pltpu.PrefetchScalarGridSpec(
            num_scalar_prefetch=0,
            grid=(nt, B),                    # time axis first (megacore split)
            in_specs=[
                pl.BlockSpec((1, 1, C + 1, w_win), lambda i, b: (b, i, 0, 0)),
                pl.BlockSpec((K, H, C), lambda i, b: (0, 0, 0)),
                pl.BlockSpec((H, 1), lambda i, b: (0, 0)),
                pl.BlockSpec((K, C, H), lambda i, b: (0, 0, 0)),
                pl.BlockSpec((C, 1), lambda i, b: (0, 0)),
            ],
            out_specs=pl.BlockSpec((1, C, tile_t), lambda i, b: (b, 0, i)),
        ),
        compiler_params=pltpu.CompilerParams(
            dimension_semantics=("parallel", "parallel"),
            vmem_limit_bytes=32 * 1024 * 1024,   # fits v7x 64 MiB/TC with headroom
        ),
    )(xw, w1t, b1c, w2t, b2c)


def ref_forward(x, mask, w1, b1, w2, b2, kernel_size, activation=None):
    """Pure-JAX reference matching torch.nn.Conv1d semantics, mirroring the
    kernel's bf16 rounding of matmul operands (f32 accumulation)."""
    p = kernel_size // 2
    f32, bf16 = jnp.float32, jnp.bfloat16
    xb = x.astype(bf16).astype(f32)
    w1f = w1.astype(bf16).astype(f32)          # [H, C, K] == OIH
    w2f = w2.astype(bf16).astype(f32)          # [C, H, K] == OIH
    dn = ("NCH", "OIH", "NCH")
    h = jax.lax.conv_general_dilated(xb * mask, w1f, (1,), [(p, p)],
                                     dimension_numbers=dn,
                                     precision=jax.lax.Precision.HIGHEST)
    h = h + b1[None, :, None]
    if activation == "gelu":
        h = h * jax.nn.sigmoid(1.702 * h)
    else:
        h = jnp.maximum(h, 0.0)
    hm = (h * mask).astype(bf16).astype(f32)
    y = jax.lax.conv_general_dilated(hm, w2f, (1,), [(p, p)],
                                     dimension_numbers=dn,
                                     precision=jax.lax.Precision.HIGHEST)
    y = y + b2[None, :, None]
    return y * mask


if __name__ == "__main__":
    B, C_BASE, HIDDEN, T, K = 2, 8, 32, 200, 5

    key = jax.random.PRNGKey(0)
    kx, kw1, kb1, kw2, kb2 = jax.random.split(key, 5)

    x = jax.random.normal(kx, (B, C_BASE, T), dtype=jnp.float32)

    # Sequence-length mask [B, 1, T]; second sequence ends mid-sequence.
    lengths = jnp.array([T, 131])
    x_mask = (jnp.arange(T)[None, None, :] < lengths[:, None, None]).astype(
        jnp.float32)

    # PyTorch nn.Conv1d layout [C_out, C_in, K], uniform(+-1/sqrt(fan_in)) init.
    bound1 = 1.0 / (C_BASE * K) ** 0.5
    bound2 = 1.0 / (HIDDEN * K) ** 0.5
    w1 = jax.random.uniform(kw1, (HIDDEN, C_BASE, K), jnp.float32, -bound1, bound1)
    b1 = jax.random.uniform(kb1, (HIDDEN,), jnp.float32, -bound1, bound1)
    w2 = jax.random.uniform(kw2, (C_BASE, HIDDEN, K), jnp.float32, -bound2, bound2)
    b2 = jax.random.uniform(kb2, (C_BASE,), jnp.float32, -bound2, bound2)

    out = dual_conv(x, x_mask, w1, b1, w2, b2, kernel_size=K, activation=None)
    out = jax.block_until_ready(out)

    ref = ref_forward(x, x_mask, w1, b1, w2, b2, K, activation=None)
    assert out.shape == (B, C_BASE, T)
    max_err = float(jnp.max(jnp.abs(out - ref)))
    assert jnp.allclose(out, ref, atol=1e-2, rtol=1e-2), max_err

    print("KERNEL_OK")
</pallas_src>

<mosaic_0001>
module attributes {stable_mosaic.version = 11 : i64} {
  func.func @dual_conv_kernel(%arg0: i32, %arg1: i32, %arg2: memref<1x1x9x264xbf16, #tpu.memory_space<vmem>>, %arg3: memref<5x32x8xbf16, #tpu.memory_space<vmem>>, %arg4: memref<32x1xf32, #tpu.memory_space<vmem>>, %arg5: memref<5x8x32xbf16, #tpu.memory_space<vmem>>, %arg6: memref<8x1xf32, #tpu.memory_space<vmem>>, %arg7: memref<1x8x256xf32, #tpu.memory_space<vmem>>) attributes {dimension_semantics = [#tpu.dimension_semantics<parallel>, #tpu.dimension_semantics<parallel>], iteration_bounds = array<i64: 1, 2>, scalar_prefetch = 0 : i64, scratch_operands = 0 : i64, tpu.core_type = #tpu.core_type<tc>, window_params = [{transform_indices = @transform_0, window_bounds = array<i64: 1, 1, 9, 264>}, {pipeline_mode = #tpu.pipeline_mode<synchronous>, transform_indices = @transform_1, window_bounds = array<i64: 5, 32, 8>}, {pipeline_mode = #tpu.pipeline_mode<synchronous>, transform_indices = @transform_2, window_bounds = array<i64: 32, 1>}, {pipeline_mode = #tpu.pipeline_mode<synchronous>, transform_indices = @transform_3, window_bounds = array<i64: 5, 8, 32>}, {pipeline_mode = #tpu.pipeline_mode<synchronous>, transform_indices = @transform_4, window_bounds = array<i64: 8, 1>}, {transform_indices = @transform_5, window_bounds = array<i64: 1, 8, 256>}]} {
    %c0 = arith.constant 0 : index
    %c0_0 = arith.constant 0 : index
    %c0_1 = arith.constant 0 : index
    %c0_2 = arith.constant 0 : index
    %0 = vector.load %arg2[%c0, %c0_0, %c0_1, %c0_2] : memref<1x1x9x264xbf16, #tpu.memory_space<vmem>>, vector<1x1x9x264xbf16>
    %1 = vector.shape_cast %0 : vector<1x1x9x264xbf16> to vector<9x264xbf16>
    %2 = vector.extract_strided_slice %1 {offsets = [0, 0], sizes = [8, 264], strides = [1, 1]} : vector<9x264xbf16> to vector<8x264xbf16>
    %3 = vector.extract_strided_slice %1 {offsets = [8, 0], sizes = [1, 264], strides = [1, 1]} : vector<9x264xbf16> to vector<1x264xbf16>
    %4 = vector.broadcast %3 : vector<1x264xbf16> to vector<8x264xbf16>
    %5 = arith.mulf %2, %4 : vector<8x264xbf16>
    %c0_3 = arith.constant 0 : index
    %c0_4 = arith.constant 0 : index
    %c0_5 = arith.constant 0 : index
    %6 = vector.load %arg3[%c0_3, %c0_4, %c0_5] : memref<5x32x8xbf16, #tpu.memory_space<vmem>>, vector<1x32x8xbf16>
    %7 = vector.shape_cast %6 : vector<1x32x8xbf16> to vector<32x8xbf16>
    %8 = vector.extract_strided_slice %5 {offsets = [0, 0], sizes = [8, 260], strides = [1, 1]} : vector<8x264xbf16> to vector<8x260xbf16>
    %cst = arith.constant dense<0.000000e+00> : vector<32x260xf32>
    %9 = tpu.matmul %7, %8, %cst {dimension_numbers = #tpu.dot_dimension_numbers<[1], [0], [0], [1], [0, 0, 1, 1], [], []>} : vector<32x8xbf16>, vector<8x260xbf16>, vector<32x260xf32> -> vector<32x260xf32>
    %c1 = arith.constant 1 : index
    %c0_6 = arith.constant 0 : index
    %c0_7 = arith.constant 0 : index
    %10 = vector.load %arg3[%c1, %c0_6, %c0_7] : memref<5x32x8xbf16, #tpu.memory_space<vmem>>, vector<1x32x8xbf16>
    %11 = vector.shape_cast %10 : vector<1x32x8xbf16> to vector<32x8xbf16>
    %12 = vector.extract_strided_slice %5 {offsets = [0, 1], sizes = [8, 260], strides = [1, 1]} : vector<8x264xbf16> to vector<8x260xbf16>
    %cst_8 = arith.constant dense<0.000000e+00> : vector<32x260xf32>
    %13 = tpu.matmul %11, %12, %cst_8 {dimension_numbers = #tpu.dot_dimension_numbers<[1], [0], [0], [1], [0, 0, 1, 1], [], []>} : vector<32x8xbf16>, vector<8x260xbf16>, vector<32x260xf32> -> vector<32x260xf32>
    %14 = arith.addf %9, %13 : vector<32x260xf32>
    %c2 = arith.constant 2 : index
    %c0_9 = arith.constant 0 : index
    %c0_10 = arith.constant 0 : index
    %15 = vector.load %arg3[%c2, %c0_9, %c0_10] : memref<5x32x8xbf16, #tpu.memory_space<vmem>>, vector<1x32x8xbf16>
    %16 = vector.shape_cast %15 : vector<1x32x8xbf16> to vector<32x8xbf16>
    %17 = vector.extract_strided_slice %5 {offsets = [0, 2], sizes = [8, 260], strides = [1, 1]} : vector<8x264xbf16> to vector<8x260xbf16>
    %cst_11 = arith.constant dense<0.000000e+00> : vector<32x260xf32>
    %18 = tpu.matmul %16, %17, %cst_11 {dimension_numbers = #tpu.dot_dimension_numbers<[1], [0], [0], [1], [0, 0, 1, 1], [], []>} : vector<32x8xbf16>, vector<8x260xbf16>, vector<32x260xf32> -> vector<32x260xf32>
    %19 = arith.addf %14, %18 : vector<32x260xf32>
    %c3 = arith.constant 3 : index
    %c0_12 = arith.constant 0 : index
    %c0_13 = arith.constant 0 : index
    %20 = vector.load %arg3[%c3, %c0_12, %c0_13] : memref<5x32x8xbf16, #tpu.memory_space<vmem>>, vector<1x32x8xbf16>
    %21 = vector.shape_cast %20 : vector<1x32x8xbf16> to vector<32x8xbf16>
    %22 = vector.extract_strided_slice %5 {offsets = [0, 3], sizes = [8, 260], strides = [1, 1]} : vector<8x264xbf16> to vector<8x260xbf16>
    %cst_14 = arith.constant dense<0.000000e+00> : vector<32x260xf32>
    %23 = tpu.matmul %21, %22, %cst_14 {dimension_numbers = #tpu.dot_dimension_numbers<[1], [0], [0], [1], [0, 0, 1, 1], [], []>} : vector<32x8xbf16>, vector<8x260xbf16>, vector<32x260xf32> -> vector<32x260xf32>
    %24 = arith.addf %19, %23 : vector<32x260xf32>
    %c4 = arith.constant 4 : index
    %c0_15 = arith.constant 0 : index
    %c0_16 = arith.constant 0 : index
    %25 = vector.load %arg3[%c4, %c0_15, %c0_16] : memref<5x32x8xbf16, #tpu.memory_space<vmem>>, vector<1x32x8xbf16>
    %26 = vector.shape_cast %25 : vector<1x32x8xbf16> to vector<32x8xbf16>
    %27 = vector.extract_strided_slice %5 {offsets = [0, 4], sizes = [8, 260], strides = [1, 1]} : vector<8x264xbf16> to vector<8x260xbf16>
    %cst_17 = arith.constant dense<0.000000e+00> : vector<32x260xf32>
    %28 = tpu.matmul %26, %27, %cst_17 {dimension_numbers = #tpu.dot_dimension_numbers<[1], [0], [0], [1], [0, 0, 1, 1], [], []>} : vector<32x8xbf16>, vector<8x260xbf16>, vector<32x260xf32> -> vector<32x260xf32>
    %29 = arith.addf %24, %28 : vector<32x260xf32>
    %c0_18 = arith.constant 0 : index
    %c0_19 = arith.constant 0 : index
    %30 = vector.load %arg4[%c0_18, %c0_19] : memref<32x1xf32, #tpu.memory_space<vmem>>, vector<32x1xf32>
    %31 = vector.broadcast %30 : vector<32x1xf32> to vector<32x260xf32>
    %32 = arith.addf %29, %31 : vector<32x260xf32>
    %cst_20 = arith.constant 0.000000e+00 : f32
    %33 = vector.broadcast %cst_20 : f32 to vector<32x260xf32>
    %34 = arith.maximumf %32, %33 : vector<32x260xf32>
    %35 = arith.truncf %34 : vector<32x260xf32> to vector<32x260xbf16>
    %36 = vector.extract_strided_slice %3 {offsets = [0, 2], sizes = [1, 260], strides = [1, 1]} : vector<1x264xbf16> to vector<1x260xbf16>
    %37 = vector.broadcast %36 : vector<1x260xbf16> to vector<32x260xbf16>
    %38 = arith.mulf %35, %37 : vector<32x260xbf16>
    %c0_21 = arith.constant 0 : index
    %c0_22 = arith.constant 0 : index
    %c0_23 = arith.constant 0 : index
    %39 = vector.load %arg5[%c0_21, %c0_22, %c0_23] : memref<5x8x32xbf16, #tpu.memory_space<vmem>>, vector<1x8x32xbf16>
    %40 = vector.shape_cast %39 : vector<1x8x32xbf16> to vector<8x32xbf16>
    %41 = vector.extract_strided_slice %38 {offsets = [0, 0], sizes = [32, 256], strides = [1, 1]} : vector<32x260xbf16> to vector<32x256xbf16>
    %cst_24 = arith.constant dense<0.000000e+00> : vector<8x256xf32>
    %42 = tpu.matmul %40, %41, %cst_24 {dimension_numbers = #tpu.dot_dimension_numbers<[1], [0], [0], [1], [0, 0, 1, 1], [], []>} : vector<8x32xbf16>, vector<32x256xbf16>, vector<8x256xf32> -> vector<8x256xf32>
    %c1_25 = arith.constant 1 : index
    %c0_26 = arith.constant 0 : index
    %c0_27 = arith.constant 0 : index
    %43 = vector.load %arg5[%c1_25, %c0_26, %c0_27] : memref<5x8x32xbf16, #tpu.memory_space<vmem>>, vector<1x8x32xbf16>
    %44 = vector.shape_cast %43 : vector<1x8x32xbf16> to vector<8x32xbf16>
    %45 = vector.extract_strided_slice %38 {offsets = [0, 1], sizes = [32, 256], strides = [1, 1]} : vector<32x260xbf16> to vector<32x256xbf16>
    %cst_28 = arith.constant dense<0.000000e+00> : vector<8x256xf32>
    %46 = tpu.matmul %44, %45, %cst_28 {dimension_numbers = #tpu.dot_dimension_numbers<[1], [0], [0], [1], [0, 0, 1, 1], [], []>} : vector<8x32xbf16>, vector<32x256xbf16>, vector<8x256xf32> -> vector<8x256xf32>
    %47 = arith.addf %42, %46 : vector<8x256xf32>
    %c2_29 = arith.constant 2 : index
    %c0_30 = arith.constant 0 : index
    %c0_31 = arith.constant 0 : index
    %48 = vector.load %arg5[%c2_29, %c0_30, %c0_31] : memref<5x8x32xbf16, #tpu.memory_space<vmem>>, vector<1x8x32xbf16>
    %49 = vector.shape_cast %48 : vector<1x8x32xbf16> to vector<8x32xbf16>
    %50 = vector.extract_strided_slice %38 {offsets = [0, 2], sizes = [32, 256], strides = [1, 1]} : vector<32x260xbf16> to vector<32x256xbf16>
    %cst_32 = arith.constant dense<0.000000e+00> : vector<8x256xf32>
    %51 = tpu.matmul %49, %50, %cst_32 {dimension_numbers = #tpu.dot_dimension_numbers<[1], [0], [0], [1], [0, 0, 1, 1], [], []>} : vector<8x32xbf16>, vector<32x256xbf16>, vector<8x256xf32> -> vector<8x256xf32>
    %52 = arith.addf %47, %51 : vector<8x256xf32>
    %c3_33 = arith.constant 3 : index
    %c0_34 = arith.constant 0 : index
    %c0_35 = arith.constant 0 : index
    %53 = vector.load %arg5[%c3_33, %c0_34, %c0_35] : memref<5x8x32xbf16, #tpu.memory_space<vmem>>, vector<1x8x32xbf16>
    %54 = vector.shape_cast %53 : vector<1x8x32xbf16> to vector<8x32xbf16>
    %55 = vector.extract_strided_slice %38 {offsets = [0, 3], sizes = [32, 256], strides = [1, 1]} : vector<32x260xbf16> to vector<32x256xbf16>
    %cst_36 = arith.constant dense<0.000000e+00> : vector<8x256xf32>
    %56 = tpu.matmul %54, %55, %cst_36 {dimension_numbers = #tpu.dot_dimension_numbers<[1], [0], [0], [1], [0, 0, 1, 1], [], []>} : vector<8x32xbf16>, vector<32x256xbf16>, vector<8x256xf32> -> vector<8x256xf32>
    %57 = arith.addf %52, %56 : vector<8x256xf32>
    %c4_37 = arith.constant 4 : index
    %c0_38 = arith.constant 0 : index
    %c0_39 = arith.constant 0 : index
    %58 = vector.load %arg5[%c4_37, %c0_38, %c0_39] : memref<5x8x32xbf16, #tpu.memory_space<vmem>>, vector<1x8x32xbf16>
    %59 = vector.shape_cast %58 : vector<1x8x32xbf16> to vector<8x32xbf16>
    %60 = vector.extract_strided_slice %38 {offsets = [0, 4], sizes = [32, 256], strides = [1, 1]} : vector<32x260xbf16> to vector<32x256xbf16>
    %cst_40 = arith.constant dense<0.000000e+00> : vector<8x256xf32>
    %61 = tpu.matmul %59, %60, %cst_40 {dimension_numbers = #tpu.dot_dimension_numbers<[1], [0], [0], [1], [0, 0, 1, 1], [], []>} : vector<8x32xbf16>, vector<32x256xbf16>, vector<8x256xf32> -> vector<8x256xf32>
    %62 = arith.addf %57, %61 : vector<8x256xf32>
    %c0_41 = arith.constant 0 : index
    %c0_42 = arith.constant 0 : index
    %63 = vector.load %arg6[%c0_41, %c0_42] : memref<8x1xf32, #tpu.memory_space<vmem>>, vector<8x1xf32>
    %64 = vector.broadcast %63 : vector<8x1xf32> to vector<8x256xf32>
    %65 = arith.addf %62, %64 : vector<8x256xf32>
    %66 = vector.extract_strided_slice %3 {offsets = [0, 4], sizes = [1, 256], strides = [1, 1]} : vector<1x264xbf16> to vector<1x256xbf16>
    %67 = arith.extf %66 : vector<1x256xbf16> to vector<1x256xf32>
    %68 = vector.broadcast %67 : vector<1x256xf32> to vector<8x256xf32>
    %69 = arith.mulf %65, %68 : vector<8x256xf32>
    %c0_43 = arith.constant 0 : index
    %c0_44 = arith.constant 0 : index
    %c0_45 = arith.constant 0 : index
    %70 = vector.load %arg7[%c0_43, %c0_44, %c0_45] : memref<1x8x256xf32, #tpu.memory_space<vmem>>, vector<1x8x256xf32>
    %71 = vector.shape_cast %70 : vector<1x8x256xf32> to vector<8x256xf32>
    %72 = vector.shape_cast %69 : vector<8x256xf32> to vector<1x8x256xf32>
    tpu.vector_store %arg7[%c0_43, %c0_44, %c0_45], %72 {strides = array<i32>} : memref<1x8x256xf32, #tpu.memory_space<vmem>>, vector<1x8x256xf32>,
    return
  }
  func.func @transform_0(%arg0: i32, %arg1: i32) -> (i32, i32, i32, i32) {
    %c0_i32 = arith.constant 0 : i32
    %c0_i32_0 = arith.constant 0 : i32
    %c0_i32_1 = arith.constant 0 : i32
    return %arg1, %arg0, %c0_i32, %c0_i32_0 : i32, i32, i32, i32
  }
  func.func @transform_1(%arg0: i32, %arg1: i32) -> (i32, i32, i32) {
    %c0_i32 = arith.constant 0 : i32
    %c0_i32_0 = arith.constant 0 : i32
    %c0_i32_1 = arith.constant 0 : i32
    %c0_i32_2 = arith.constant 0 : i32
    return %c0_i32, %c0_i32_0, %c0_i32_1 : i32, i32, i32
  }
  func.func @transform_2(%arg0: i32, %arg1: i32) -> (i32, i32) {
    %c0_i32 = arith.constant 0 : i32
    %c0_i32_0 = arith.constant 0 : i32
    %c0_i32_1 = arith.constant 0 : i32
    return %c0_i32, %c0_i32_0 : i32, i32
  }
  func.func @transform_3(%arg0: i32, %arg1: i32) -> (i32, i32, i32) {
    %c0_i32 = arith.constant 0 : i32
    %c0_i32_0 = arith.constant 0 : i32
    %c0_i32_1 = arith.constant 0 : i32
    %c0_i32_2 = arith.constant 0 : i32
    return %c0_i32, %c0_i32_0, %c0_i32_1 : i32, i32, i32
  }
  func.func @transform_4(%arg0: i32, %arg1: i32) -> (i32, i32) {
    %c0_i32 = arith.constant 0 : i32
    %c0_i32_0 = arith.constant 0 : i32
    %c0_i32_1 = arith.constant 0 : i32
    return %c0_i32, %c0_i32_0 : i32, i32
  }
  func.func @transform_5(%arg0: i32, %arg1: i32) -> (i32, i32, i32) {
    %c0_i32 = arith.constant 0 : i32
    %c0_i32_0 = arith.constant 0 : i32
    return %arg1, %c0_i32, %arg0 : i32, i32, i32
  }
}

</mosaic_0001>

<llo_original>
// kernel: tpu_custom_call.1
$region0: #{tpu_custom_call.1}
  #allocation0 [shape = 'u32[]', space=smem, size = 0x4, offset = 0x4, fixed_abs, tag = 'smem constant byte address 0x4 - core index']
  #allocation1 [shape = 'u32[144,128]{1,0:T(1,128)}', space=vmem, size = 0x12000, scoped, tag = 'internal scratch']
  %s0 = inlined_call_operand.vmem [shape: bf16[2,1,9,264], index: 0, kind: input, shape index: {}]
  %s1 = inlined_call_operand.vmem [shape: bf16[5,32,8], index: 1, kind: input, shape index: {}]
  %s2 = inlined_call_operand.vmem [shape: f32[32,1], index: 2, kind: input, shape index: {}]
  %s3 = inlined_call_operand.vmem [shape: bf16[5,8,32], index: 3, kind: input, shape index: {}]
  %s4 = inlined_call_operand.vmem [shape: f32[8,1], index: 4, kind: input, shape index: {}]
  %s5 = inlined_call_operand.hbm [shape: f32[2,8,200], index: 5, kind: output, shape index: {}]
  %s6 = sld [smem:[#allocation0]]
  $region53: #{tpu_custom_call.1} parent=0
    _
  %s8 = ssub.s32 1, %s6
  %s9 = scalar_select 0, %s8, %s6
  $region1: #{tpu_custom_call.1} parent=0
    #allocation2 [shape = 'u8[16384]{0}', space=vmem, size = 0x4000, scoped, tag = 'output window, operand 0']
    #allocation3 [shape = 's32[2]{0}', space=sflag, size = 0x8, scoped, tag = 'scoped memory for tpu_custom_call.1']
    %10 = vsyncpa [#allocation3], 0
    %s11 = scalar_lea.sflag [#allocation3], 1
    %12 = vsyncpa %s11, 0
    loop: start=0, step=1, limit=4
    $region2: #{tpu_custom_call.1} parent=1 // loop_pre_header
      _
    $region3: #{tpu_custom_call.1} parent=1 // loop_header
      %s14 = sphi 0, %s18
      %p15 = scmp.ge.s32.totalorder %s14, 4
      %s21 = sphi 0, %s33
      %s22 = sphi 0, %s29
      %s23 = sphi 0, %s21
      %s24 = sphi 0, %s22
      %s25 = sphi 0, %s23
      %s26 = sphi 0, %s24
      %s38 = sphi 0, %s40
      %s41 = sphi 0, %s38
      %s42 = sphi 0, %s41
      %s58 = sphi 0, %s42
      %s62 = sphi 0, %s62
      %s64 = sphi 0, %s62
      %s65 = sphi 0, %s64
      %s79 = sphi 0, %s65
      %s83 = sphi 0, %s83
      %s85 = sphi 0, %s83
      %s86 = sphi 0, %s85
      %s100 = sphi 0, %s86
      %s104 = sphi 0, %s104
      %s106 = sphi 0, %s104
      %s107 = sphi 0, %s106
      %s121 = sphi 0, %s107
      %s125 = sphi 0, %s125
      %s127 = sphi 0, %s125
      %s128 = sphi 0, %s127
      %s142 = sphi 0, %s128
      %s150 = sphi 0, %s152
      %s153 = sphi 0, %s150
      %s154 = sphi 0, %s153
      %s170 = sphi 0, %s154
    $region4: #{tpu_custom_call.1} parent=1 // loop_header_branch
      %17 = sbr.rel (%p15) target = $region8
    $region5: #{tpu_custom_call.1} parent=1 // loop_body
      %s19 = ssub.s32 %s14, 1
      %s20 = ssub.s32 %s14, 2
      %s27 = sadd.s32 1, %s22
      %p28 = scmp.ge.s32.totalorder %s27, 2
      %s29 = scalar_select %p28, 0, %s27
      %s30 = sadd.s32 1, %s21
      %s31 = scalar_select %p28, %s30, %s21
      %p32 = scmp.ge.s32.totalorder %s31, 1
      %s33 = scalar_select %p32, 0, %s31
      %s34 = ssub.s32 %s22, %s29
      %s35 = ssub.s32 %s21, %s33
      %s36 = sor.u32 %s34, %s35
      %p37 = scmp.eq.s32.totalorder %s36, 0
      %s39 = sadd.s32 %s38, 1
      %s40 = scalar_select %p37, %s38, %s39
      %p43 = pneg %p37
      %p44 = scmp.eq.s32.totalorder %s14, 1
      %p45 = por %p43, %p44
      %p46 = scmp.ne.s32.totalorder %s38, %s41
      %p47 = scmp.eq.s32.totalorder %s14, 0
      %p48 = por %p46, %p47
      %p49 = scmp.ne.s32.totalorder %s38, %s41
      %p50 = scmp.eq.s32.totalorder %s19, 1
      %p51 = por %p49, %p50
      %p52 = scmp.ne.s32.totalorder %s41, %s42
      %p53 = scmp.eq.s32.totalorder %s19, 0
      %p54 = por %p52, %p53
      %p55 = scmp.ne.s32.totalorder %s41, %s42
      %p56 = scmp.eq.s32.totalorder %s20, 1
      %p57 = por %p55, %p56
      %p59 = scmp.ne.s32.totalorder %s42, %s58
      %p60 = scmp.eq.s32.totalorder %s20, 0
      %p61 = por %p59, %p60
      %s63 = sadd.s32 %s62, 1
      %p66 = scmp.eq.s32.totalorder %s14, 1
      %p67 = scmp.ne.s32.totalorder %s62, %s64
      %p68 = scmp.eq.s32.totalorder %s14, 0
      %p69 = por %p67, %p68
      %p70 = scmp.ne.s32.totalorder %s62, %s64
      %p71 = scmp.eq.s32.totalorder %s19, 1
      %p72 = por %p70, %p71
      %p73 = scmp.ne.s32.totalorder %s64, %s65
      %p74 = scmp.eq.s32.totalorder %s19, 0
      %p75 = por %p73, %p74
      %p76 = scmp.ne.s32.totalorder %s64, %s65
      %p77 = scmp.eq.s32.totalorder %s20, 1
      %p78 = por %p76, %p77
      %p80 = scmp.ne.s32.totalorder %s65, %s79
      %p81 = scmp.eq.s32.totalorder %s20, 0
      %p82 = por %p80, %p81
      %s84 = sadd.s32 %s83, 1
      %p87 = scmp.eq.s32.totalorder %s14, 1
      %p88 = scmp.ne.s32.totalorder %s83, %s85
      %p89 = scmp.eq.s32.totalorder %s14, 0
      %p90 = por %p88, %p89
      %p91 = scmp.ne.s32.totalorder %s83, %s85
      %p92 = scmp.eq.s32.totalorder %s19, 1
      %p93 = por %p91, %p92
      %p94 = scmp.ne.s32.totalorder %s85, %s86
      %p95 = scmp.eq.s32.totalorder %s19, 0
      %p96 = por %p94, %p95
      %p97 = scmp.ne.s32.totalorder %s85, %s86
      %p98 = scmp.eq.s32.totalorder %s20, 1
      %p99 = por %p97, %p98
      %p101 = scmp.ne.s32.totalorder %s86, %s100
      %p102 = scmp.eq.s32.totalorder %s20, 0
      %p103 = por %p101, %p102
      %s105 = sadd.s32 %s104, 1
      %p108 = scmp.eq.s32.totalorder %s14, 1
      %p109 = scmp.ne.s32.totalorder %s104, %s106
      %p110 = scmp.eq.s32.totalorder %s14, 0
      %p111 = por %p109, %p110
      %p112 = scmp.ne.s32.totalorder %s104, %s106
      %p113 = scmp.eq.s32.totalorder %s19, 1
      %p114 = por %p112, %p113
      %p115 = scmp.ne.s32.totalorder %s106, %s107
      %p116 = scmp.eq.s32.totalorder %s19, 0
      %p117 = por %p115, %p116
      %p118 = scmp.ne.s32.totalorder %s106, %s107
      %p119 = scmp.eq.s32.totalorder %s20, 1
      %p120 = por %p118, %p119
      %p122 = scmp.ne.s32.totalorder %s107, %s121
      %p123 = scmp.eq.s32.totalorder %s20, 0
      %p124 = por %p122, %p123
      %s126 = sadd.s32 %s125, 1
      %p129 = scmp.eq.s32.totalorder %s14, 1
      %p130 = scmp.ne.s32.totalorder %s125, %s127
      %p131 = scmp.eq.s32.totalorder %s14, 0
      %p132 = por %p130, %p131
      %p133 = scmp.ne.s32.totalorder %s125, %s127
      %p134 = scmp.eq.s32.totalorder %s19, 1
      %p135 = por %p133, %p134
      %p136 = scmp.ne.s32.totalorder %s127, %s128
      %p137 = scmp.eq.s32.totalorder %s19, 0
      %p138 = por %p136, %p137
      %p139 = scmp.ne.s32.totalorder %s127, %s128
      %p140 = scmp.eq.s32.totalorder %s20, 1
      %p141 = por %p139, %p140
      %p143 = scmp.ne.s32.totalorder %s128, %s142
      %p144 = scmp.eq.s32.totalorder %s20, 0
      %p145 = por %p143, %p144
      %s146 = ssub.s32 %s22, %s29
      %s147 = ssub.s32 %s21, %s33
      %s148 = sor.u32 %s146, %s147
      %p149 = scmp.eq.s32.totalorder %s148, 0
      %s151 = sadd.s32 %s150, 1
      %s152 = scalar_select %p149, %s150, %s151
      %p155 = pneg %p149
      %p156 = scmp.eq.s32.totalorder %s14, 1
      %p157 = por %p155, %p156
      %p158 = scmp.ne.s32.totalorder %s150, %s153
      %p159 = scmp.eq.s32.totalorder %s14, 0
      %p160 = por %p158, %p159
      %p161 = scmp.ne.s32.totalorder %s150, %s153
      %p162 = scmp.eq.s32.totalorder %s19, 1
      %p163 = por %p161, %p162
      %p164 = scmp.ne.s32.totalorder %s153, %s154
      %p165 = scmp.eq.s32.totalorder %s19, 0
      %p166 = por %p164, %p165
      %p167 = scmp.ne.s32.totalorder %s153, %s154
      %p168 = scmp.eq.s32.totalorder %s20, 1
      %p169 = por %p167, %p168
      %p171 = scmp.ne.s32.totalorder %s154, %s170
      %p172 = scmp.eq.s32.totalorder %s20, 0
      %p173 = por %p171, %p172
      %p174 = scmp.le.s32.totalorder 1, %s14
      %p175 = scmp.lt.s32.totalorder %s14, 3
      %p176 = pnand %p174, %p175
      %p177 = pneg %p176
      // Predicated region
      $region9: #{tpu_custom_call.1} parent=5 // pred_check
        _
      $region10: #{tpu_custom_call.1} parent=5 // pred_check_branch
        %179 = sbr.rel (%p176) target = $region12
      $region11: #{tpu_custom_call.1} parent=5 // pred_region
        %s180 = ssub.s32 %s14, 1
        // Predicated region
        $region13: #{tpu_custom_call.1} parent=11 // pred_check
          %p181 = pneg %p75
        $region14: #{tpu_custom_call.1} parent=11 // pred_check_branch
          %183 = sbr.rel (%p181) target = $region16
        $region15: #{tpu_custom_call.1} parent=11 // pred_region
          _
        $region16: #{tpu_custom_call.1} parent=11 // pred_fallthru
          _
        // Predicated region
        $region17: #{tpu_custom_call.1} parent=11 // pred_check
          %p184 = pneg %p96
        $region18: #{tpu_custom_call.1} parent=11 // pred_check_branch
          %186 = sbr.rel (%p184) target = $region20
        $region19: #{tpu_custom_call.1} parent=11 // pred_region
          _
        $region20: #{tpu_custom_call.1} parent=11 // pred_fallthru
          _
        // Predicated region
        $region21: #{tpu_custom_call.1} parent=11 // pred_check
          %p187 = pneg %p117
        $region22: #{tpu_custom_call.1} parent=11 // pred_check_branch
          %189 = sbr.rel (%p187) target = $region24
        $region23: #{tpu_custom_call.1} parent=11 // pred_region
          _
        $region24: #{tpu_custom_call.1} parent=11 // pred_fallthru
          _
        // Predicated region
        $region25: #{tpu_custom_call.1} parent=11 // pred_check
          %p190 = pneg %p138
        $region26: #{tpu_custom_call.1} parent=11 // pred_check_branch
          %192 = sbr.rel (%p190) target = $region28
        $region27: #{tpu_custom_call.1} parent=11 // pred_region
          _
        $region28: #{tpu_custom_call.1} parent=11 // pred_fallthru
          _
      $region12: #{tpu_custom_call.1} parent=5 // pred_fallthru
        _
      %p193 = scmp.lt.s32.totalorder %s14, 2
      // Predicated region
      $region29: #{tpu_custom_call.1} parent=5 // pred_check
        %p194 = pneg %p193
      $region30: #{tpu_custom_call.1} parent=5 // pred_check_branch
        %196 = sbr.rel (%p194) target = $region32
      $region31: #{tpu_custom_call.1} parent=5 // pred_region
        // Predicated region
        $region33: #{tpu_custom_call.1} parent=31 // pred_check
          %p197 = pneg %p48
        $region34: #{tpu_custom_call.1} parent=31 // pred_check_branch
          %199 = sbr.rel (%p197) target = $region36
        $region35: #{tpu_custom_call.1} parent=31 // pred_region
          %p200 = scmp.lt.s32.totalorder %s22, 1
          %s201 = scalar_select %p200, %s22, 1
          %p202 = scmp.lt.s32.totalorder %s21, 0
          %s203 = scalar_select %p202, %s21, 0
          %s204 = smul.addr %s203, 6
          %s205 = smul.addr %s201, 6
          %s206 = sadd.s32 %s204, %s205
          %s207 = smul.addr %s206, 4
          %s208 = scalar_lea.vmem %s0, %s207
        $region36: #{tpu_custom_call.1} parent=31 // pred_fallthru
          _
      $region32: #{tpu_custom_call.1} parent=5 // pred_fallthru
        _
      %p209 = scmp.le.s32.totalorder 1, %s14
      %p210 = scmp.lt.s32.totalorder %s14, 3
      %p211 = pnand %p209, %p210
      %p212 = pneg %p211
      // Predicated region
      $region37: #{tpu_custom_call.1} parent=5 // pred_check
        _
      $region38: #{tpu_custom_call.1} parent=5 // pred_check_branch
        %214 = sbr.rel (%p211) target = $region40
      $region39: #{tpu_custom_call.1} parent=5 // pred_region
        %s215 = ssub.s32 %s14, 1
        %p216 = scmp.lt.s32.totalorder %s24, 1
        %s217 = scalar_select %p216, %s24, 1
        %p218 = scmp.lt.s32.totalorder %s23, 0
        %s219 = scalar_select %p218, %s23, 0
        %s220 = smul.addr %s219, 6
        %s221 = smul.addr %s217, 6
        %s222 = sadd.s32 %s220, %s221
        %s223 = smul.addr %s222, 4
        %s224 = scalar_lea.vmem %s0, %s223
        %p225 = pneg %p54
        %p226 = pneg %p51
        %p227 = pneg %p75
        %p228 = pneg %p72
        %p229 = pneg %p96
        %p230 = pneg %p93
        %p231 = pneg %p117
        %p232 = pneg %p114
        %p233 = pneg %p138
        %p234 = pneg %p135
        %p235 = pneg %p166
        %p236 = pneg %p163
        %s237 = sand.u32 %s153, 1
        %s238 = scalar_lea.sflag [#allocation3], %s237
        %s239 = sand.u32 %s153, 1
        %s240 = smul.addr %s239, 16
        %s241 = scalar_lea.vmem [#allocation2], %s240
        %p242 = scmp.lt.s32.totalorder %s24, 1
        %s243 = scalar_select %p242, %s24, 1
        %p244 = scmp.lt.s32.totalorder %s23, 0
        %s245 = scalar_select %p244, %s23, 0
        %s246 = smul.addr %s245, 6
        %s247 = smul.addr %s243, 6
        %s248 = sadd.s32 %s246, %s247
        %s249 = smul.addr %s248, 4
        %s250 = scalar_lea.vmem %s0, %s249
        %s251 = smul.u32 2, %s23
        %v253 = vld [vmem:[%s250] sm:$0xff]
        %v254 = vld [vmem:[%s250 + $0x8] sm:$0xf]
        %v255 = vld [vmem:[%s250 + $0xc] sm:$0x11]
        %v256 = vld [vmem:[%s250 + $0x14] sm:$0x1]
        %v259 = vunpack.c.l.b16 %v255
        %v260 = vunpack.c.h.b16 %v255
        %v261 = vunpack.c.l.b16 %v256
        %v262 = vpack.c.b16 %v259, %v259
        %v263 = vpack.c.b16 %v260, %v260
        %v264 = vpack.c.b16 %v261, %v261
        %v266 = vpack.i.b16 %v262, %v262
        %v268 = vlaneseq
        %v269 = vshrl.u32 %v268, 7
        %v270 = vsub.s32 0, %v269
        %v271 = vrot.slane %v266, %v270
        %v273 = vpack.i.b16 %v263, %v263
        %v275 = vlaneseq
        %v276 = vshrl.u32 %v275, 7
        %v277 = vsub.s32 0, %v276
        %v278 = vrot.slane %v273, %v277
        %v280 = vpack.i.b16 %v264, %v264
        %v282 = vlaneseq
        %v283 = vshrl.u32 %v282, 7
        %v284 = vsub.s32 0, %v283
        %v285 = vrot.slane %v280, %v284
        %v289 = vunpack.c.l.b16 %v271
        %v290 = vunpack.c.l.b16 %v278
        %v291 = vunpack.c.l.b16 %v285
        %v292 = vpack.c.b16 %v290, %v289
        %v293 = vpack.c.b16 %v291, %v291
        %v296 = vmul.bf16 %v253, %v292
        %v297 = vmul.bf16 %v254, %v293
        %v298 = vld [vmem:[%s1] sm:$0xf]
        %v299 = vld [vmem:[%s1 + $0x4] sm:$0xf]
        %v300 = vld [vmem:[%s1 + $0x8] sm:$0xf]
        %v301 = vld [vmem:[%s1 + $0xc] sm:$0xf]
        %s302 = scalar_lea.vmem %s1, 16
        %v303 = vld [vmem:[%s302] sm:$0xf]
        %v304 = vld [vmem:[%s302 + $0x4] sm:$0xf]
        %v305 = vld [vmem:[%s302 + $0x8] sm:$0xf]
        %v306 = vld [vmem:[%s302 + $0xc] sm:$0xf]
        %v311 = vunpack.c.l.b16 %v303
        %v312 = vunpack.c.l.b16 %v304
        %v313 = vunpack.c.l.b16 %v305
        %v314 = vunpack.c.l.b16 %v306
        %v315 = vpack.c.b16 %v312, %v311
        %v316 = vpack.c.b16 %v314, %v313
        %v319 = vunpack.c.l.b16 %v296
        %v320 = vunpack.c.h.b16 %v296
        %v321 = vunpack.c.l.b16 %v297
        %v322 = vpack.c.b16 %v319, %v319
        %v323 = vpack.c.b16 %v320, %v320
        %v324 = vpack.c.b16 %v321, %v321
        %325 = vrot.lane.b32.xlu0 %v322, 127
        %v326 = vpop.permute.xlu0 %325
        %327 = vrot.lane.b32.xlu0 %v323, 127
        %v328 = vpop.permute.xlu0 %327
        %329 = vrot.lane.b32.xlu0 %v324, 127
        %v330 = vpop.permute.xlu0 %329
        %vm331 = vcmask 1039360
        %v332 = vsel %vm331, %v326, %v328
        %v333 = vsel %vm331, %v328, %v330
        %vm334 = vcmask 64512
        %v336 = vsel %vm334, %v315, 0
        %v339 = vsel %vm334, %v316, 0
        %vm341 = vcmask 1043456
        %v343 = vsel %vm341, %v332, 0
        %v346 = vsel %vm341, %v333, 0
        %v349 = vsel %vm341, %v330, 0
        %351 = vmatprep.subr.bf16.mxu0 %v346
        %352 = vmatpush1.bf16.msra.mxu0 %v343
        %353 = vmatprep.subr.bf16.mxu0 0
        %354 = vmatpush1.bf16.msra.mxu0 0
        %355 = vmatprep.subr.bf16.mxu0 0
        %356 = vmatpush1.bf16.msra.mxu0 0
        %357 = vmatprep.subr.bf16.mxu0 0
        %358 = vmatpush1.bf16.msra.mxu0 0
        %359 = vmatprep.subr.bf16.mxu0 0
        %360 = vmatpush1.bf16.msra.mxu0 0
        %361 = vmatprep.subr.bf16.mxu0 0
        %362 = vmatpush1.bf16.msra.mxu0 0
        %363 = vmatprep.subr.bf16.mxu0 0
        %364 = vmatpush1.bf16.msra.mxu0 0
        %365 = vmatprep.subr.bf16.mxu0 0
        %366 = vmatpush1.bf16.msra.mxu0 0
        %367 = vmatprep.subr.bf16.mxu0 0
        %368 = vmatpush1.bf16.msra.mxu0 0
        %369 = vmatprep.subr.bf16.mxu0 0
        %370 = vmatpush1.bf16.msra.mxu0 0
        %371 = vmatprep.subr.bf16.mxu0 0
        %372 = vmatpush1.bf16.msra.mxu0 0
        %373 = vmatprep.subr.bf16.mxu0 0
        %374 = vmatpush1.bf16.msra.mxu0 0
        %375 = vmatprep.subr.bf16.mxu0 0
        %376 = vmatpush1.bf16.msra.mxu0 0
        %377 = vmatprep.subr.bf16.mxu0 0
        %378 = vmatpush1.bf16.msra.mxu0 0
        %379 = vmatprep.subr.bf16.mxu0 0
        %380 = vmatpush1.bf16.msra.mxu0 0
        %381 = vmatprep.subr.bf16.mxu0 0
        %382 = vmatpush1.bf16.msra.mxu0 0
        %383 = vmatprep.mubr.bf16.mxu0 0
        %384 = vmatmul.mubr.bf16.gmra.mrb[0].mxu0 %v336
        %v385 = vpop.f32.mrb[0].mxu0
        %v386 = vadd.f32 0.0, %v385
        %v387 = vpop.f32.mrb[0].mxu0
        %v388 = vadd.f32 0.0, %v387
        %v389 = vpop.f32.mrb[0].mxu0
        %v390 = vadd.f32 0.0, %v389
        %v391 = vpop.f32.mrb[0].mxu0
        %v392 = vadd.f32 0.0, %v391
        %393 = vmatprep.mubr.bf16.mxu0 0
        %394 = vmatmul.mubr.bf16.gmra.mrb[0].mxu0 %v339
        %v395 = vpop.f32.mrb[0].mxu0
        %v396 = vadd.f32 0.0, %v395
        %v397 = vpop.f32.mrb[0].mxu0
        %v398 = vadd.f32 0.0, %v397
        %v399 = vpop.f32.mrb[0].mxu0
        %v400 = vadd.f32 0.0, %v399
        %v401 = vpop.f32.mrb[0].mxu0
        %v402 = vadd.f32 0.0, %v401
        %403 = vdwg.mxu0
        %404 = vmatprep.subr.bf16.mxu0 0
        %405 = vmatpush1.bf16.msra.mxu0 %v349
        %406 = vmatprep.subr.bf16.mxu0 0
        %407 = vmatpush1.bf16.msra.mxu0 0
        %408 = vmatprep.subr.bf16.mxu0 0
        %409 = vmatpush1.bf16.msra.mxu0 0
        %410 = vmatprep.subr.bf16.mxu0 0
        %411 = vmatpush1.bf16.msra.mxu0 0
        %412 = vmatprep.subr.bf16.mxu0 0
        %413 = vmatpush1.bf16.msra.mxu0 0
        %414 = vmatprep.subr.bf16.mxu0 0
        %415 = vmatpush1.bf16.msra.mxu0 0
        %416 = vmatprep.subr.bf16.mxu0 0
        %417 = vmatpush1.bf16.msra.mxu0 0
        %418 = vmatprep.subr.bf16.mxu0 0
        %419 = vmatpush1.bf16.msra.mxu0 0
        %420 = vmatprep.subr.bf16.mxu0 0
        %421 = vmatpush1.bf16.msra.mxu0 0
        %422 = vmatprep.subr.bf16.mxu0 0
        %423 = vmatpush1.bf16.msra.mxu0 0
        %424 = vmatprep.subr.bf16.mxu0 0
        %425 = vmatpush1.bf16.msra.mxu0 0
        %426 = vmatprep.subr.bf16.mxu0 0
        %427 = vmatpush1.bf16.msra.mxu0 0
        %428 = vmatprep.subr.bf16.mxu0 0
        %429 = vmatpush1.bf16.msra.mxu0 0
        %430 = vmatprep.subr.bf16.mxu0 0
        %431 = vmatpush1.bf16.msra.mxu0 0
        %432 = vmatprep.subr.bf16.mxu0 0
        %433 = vmatpush1.bf16.msra.mxu0 0
        %434 = vmatprep.subr.bf16.mxu0 0
        %435 = vmatpush1.bf16.msra.mxu0 0
        %436 = vmatprep.mubr.bf16.mxu0 0
        %437 = vmatmul.mubr.bf16.gmra.mrb[0].mxu0 %v336
        %v438 = vpop.f32.mrb[0].mxu0
        %v439 = vadd.f32 0.0, %v438
        %v440 = vpop.f32.mrb[0].mxu0
        %v441 = vpop.f32.mrb[0].mxu0
        %v442 = vadd.f32 0.0, %v441
        %v443 = vpop.f32.mrb[0].mxu0
        %444 = vmatprep.mubr.bf16.mxu0 0
        %445 = vmatmul.mubr.bf16.gmra.mrb[0].mxu0 %v339
        %v446 = vpop.f32.mrb[0].mxu0
        %v447 = vadd.f32 0.0, %v446
        %v448 = vpop.f32.mrb[0].mxu0
        %v449 = vpop.f32.mrb[0].mxu0
        %v450 = vadd.f32 0.0, %v449
        %v451 = vpop.f32.mrb[0].mxu0
        %452 = vdwg.mxu0
        %v457 = vunpack.c.l.b16 %v298
        %v458 = vunpack.c.l.b16 %v299
        %v459 = vunpack.c.l.b16 %v300
        %v460 = vunpack.c.l.b16 %v301
        %v461 = vpack.c.b16 %v458, %v457
        %v462 = vpack.c.b16 %v460, %v459
        %v464 = vsel %vm334, %v461, 0
        %v467 = vsel %vm334, %v462, 0
        %v470 = vsel %vm341, %v322, 0
        %v473 = vsel %vm341, %v323, 0
        %v476 = vsel %vm341, %v324, 0
        %478 = vmatprep.subr.bf16.mxu0 %v473
        %479 = vmatpush1.bf16.msra.mxu0 %v470
        %480 = vmatprep.subr.bf16.mxu0 0
        %481 = vmatpush1.bf16.msra.mxu0 0
        %482 = vmatprep.subr.bf16.mxu0 0
        %483 = vmatpush1.bf16.msra.mxu0 0
        %484 = vmatprep.subr.bf16.mxu0 0
        %485 = vmatpush1.bf16.msra.mxu0 0
        %486 = vmatprep.subr.bf16.mxu0 0
        %487 = vmatpush1.bf16.msra.mxu0 0
        %488 = vmatprep.subr.bf16.mxu0 0
        %489 = vmatpush1.bf16.msra.mxu0 0
        %490 = vmatprep.subr.bf16.mxu0 0
        %491 = vmatpush1.bf16.msra.mxu0 0
        %492 = vmatprep.subr.bf16.mxu0 0
        %493 = vmatpush1.bf16.msra.mxu0 0
        %494 = vmatprep.subr.bf16.mxu0 0
        %495 = vmatpush1.bf16.msra.mxu0 0
        %496 = vmatprep.subr.bf16.mxu0 0
        %497 = vmatpush1.bf16.msra.mxu0 0
        %498 = vmatprep.subr.bf16.mxu0 0
        %499 = vmatpush1.bf16.msra.mxu0 0
        %500 = vmatprep.subr.bf16.mxu0 0
        %501 = vmatpush1.bf16.msra.mxu0 0
        %502 = vmatprep.subr.bf16.mxu0 0
        %503 = vmatpush1.bf16.msra.mxu0 0
        %504 = vmatprep.subr.bf16.mxu0 0
        %505 = vmatpush1.bf16.msra.mxu0 0
        %506 = vmatprep.subr.bf16.mxu0 0
        %507 = vmatpush1.bf16.msra.mxu0 0
        %508 = vmatprep.subr.bf16.mxu0 0
        %509 = vmatpush1.bf16.msra.mxu0 0
        %510 = vmatprep.mubr.bf16.mxu0 0
        %511 = vmatmul.mubr.bf16.gmra.mrb[0].mxu0 %v464
        %v512 = vpop.f32.mrb[0].mxu0
        %v513 = vadd.f32 %v386, %v512
        %v514 = vpop.f32.mrb[0].mxu0
        %v515 = vadd.f32 %v388, %v514
        %v516 = vpop.f32.mrb[0].mxu0
        %v517 = vadd.f32 %v390, %v516
        %v518 = vpop.f32.mrb[0].mxu0
        %v519 = vadd.f32 %v392, %v518
        %520 = vmatprep.mubr.bf16.mxu0 0
        %521 = vmatmul.mubr.bf16.gmra.mrb[0].mxu0 %v467
        %v522 = vpop.f32.mrb[0].mxu0
        %v523 = vadd.f32 %v396, %v522
        %v524 = vpop.f32.mrb[0].mxu0
        %v525 = vadd.f32 %v398, %v524
        %v526 = vpop.f32.mrb[0].mxu0
        %v527 = vadd.f32 %v400, %v526
        %v528 = vpop.f32.mrb[0].mxu0
        %v529 = vadd.f32 %v402, %v528
        %530 = vdwg.mxu0
        %531 = vmatprep.subr.bf16.mxu0 0
        %532 = vmatpush1.bf16.msra.mxu0 %v476
        %533 = vmatprep.subr.bf16.mxu0 0
        %534 = vmatpush1.bf16.msra.mxu0 0
        %535 = vmatprep.subr.bf16.mxu0 0
        %536 = vmatpush1.bf16.msra.mxu0 0
        %537 = vmatprep.subr.bf16.mxu0 0
        %538 = vmatpush1.bf16.msra.mxu0 0
        %539 = vmatprep.subr.bf16.mxu0 0
        %540 = vmatpush1.bf16.msra.mxu0 0
        %541 = vmatprep.subr.bf16.mxu0 0
        %542 = vmatpush1.bf16.msra.mxu0 0
        %543 = vmatprep.subr.bf16.mxu0 0
        %544 = vmatpush1.bf16.msra.mxu0 0
        %545 = vmatprep.subr.bf16.mxu0 0
        %546 = vmatpush1.bf16.msra.mxu0 0
        %547 = vmatprep.subr.bf16.mxu0 0
        %548 = vmatpush1.bf16.msra.mxu0 0
        %549 = vmatprep.subr.bf16.mxu0 0
        %550 = vmatpush1.bf16.msra.mxu0 0
        %551 = vmatprep.subr.bf16.mxu0 0
        %552 = vmatpush1.bf16.msra.mxu0 0
        %553 = vmatprep.subr.bf16.mxu0 0
        %554 = vmatpush1.bf16.msra.mxu0 0
        %555 = vmatprep.subr.bf16.mxu0 0
        %556 = vmatpush1.bf16.msra.mxu0 0
        %557 = vmatprep.subr.bf16.mxu0 0
        %558 = vmatpush1.bf16.msra.mxu0 0
        %559 = vmatprep.subr.bf16.mxu0 0
        %560 = vmatpush1.bf16.msra.mxu0 0
        %561 = vmatprep.subr.bf16.mxu0 0
        %562 = vmatpush1.bf16.msra.mxu0 0
        %563 = vmatprep.mubr.bf16.mxu0 0
        %564 = vmatmul.mubr.bf16.gmra.mrb[0].mxu0 %v464
        %v565 = vpop.f32.mrb[0].mxu0
        %v566 = vadd.f32 %v439, %v565
        %v567 = vpop.f32.mrb[0].mxu0
        %v568 = vpop.f32.mrb[0].mxu0
        %v569 = vadd.f32 %v442, %v568
        %v570 = vpop.f32.mrb[0].mxu0
        %571 = vmatprep.mubr.bf16.mxu0 0
        %572 = vmatmul.mubr.bf16.gmra.mrb[0].mxu0 %v467
        %v573 = vpop.f32.mrb[0].mxu0
        %v574 = vadd.f32 %v447, %v573
        %v575 = vpop.f32.mrb[0].mxu0
        %v576 = vpop.f32.mrb[0].mxu0
        %v577 = vadd.f32 %v450, %v576
        %v578 = vpop.f32.mrb[0].mxu0
        %579 = vdwg.mxu0
        %s580 = scalar_lea.vmem %s1, 32
        %v581 = vld [vmem:[%s580] sm:$0xf]
        %v582 = vld [vmem:[%s580 + $0x4] sm:$0xf]
        %v583 = vld [vmem:[%s580 + $0x8] sm:$0xf]
        %v584 = vld [vmem:[%s580 + $0xc] sm:$0xf]
        %v589 = vunpack.c.l.b16 %v581
        %v590 = vunpack.c.l.b16 %v582
        %v591 = vunpack.c.l.b16 %v583
        %v592 = vunpack.c.l.b16 %v584
        %v593 = vpack.c.b16 %v590, %v589
        %v594 = vpack.c.b16 %v592, %v591
        %595 = vrot.lane.b32.xlu0 %v322, 126
        %v596 = vpop.permute.xlu0 %595
        %597 = vrot.lane.b32.xlu0 %v323, 126
        %v598 = vpop.permute.xlu0 %597
        %599 = vrot.lane.b32.xlu0 %v324, 126
        %v600 = vpop.permute.xlu0 %599
        %vm601 = vcmask 1031168
        %v602 = vsel %vm601, %v596, %v598
        %v603 = vsel %vm601, %v598, %v600
        %v605 = vsel %vm334, %v593, 0
        %v608 = vsel %vm334, %v594, 0
        %v611 = vsel %vm341, %v602, 0
        %v614 = vsel %vm341, %v603, 0
        %v617 = vsel %vm341, %v600, 0
        %619 = vmatprep.subr.bf16.mxu0 %v614
        %620 = vmatpush1.bf16.msra.mxu0 %v611
        %621 = vmatprep.subr.bf16.mxu0 0
        %622 = vmatpush1.bf16.msra.mxu0 0
        %623 = vmatprep.subr.bf16.mxu0 0
        %624 = vmatpush1.bf16.msra.mxu0 0
        %625 = vmatprep.subr.bf16.mxu0 0
        %626 = vmatpush1.bf16.msra.mxu0 0
        %627 = vmatprep.subr.bf16.mxu0 0
        %628 = vmatpush1.bf16.msra.mxu0 0
        %629 = vmatprep.subr.bf16.mxu0 0
        %630 = vmatpush1.bf16.msra.mxu0 0
        %631 = vmatprep.subr.bf16.mxu0 0
        %632 = vmatpush1.bf16.msra.mxu0 0
        %633 = vmatprep.subr.bf16.mxu0 0
        %634 = vmatpush1.bf16.msra.mxu0 0
        %635 = vmatprep.subr.bf16.mxu0 0
        %636 = vmatpush1.bf16.msra.mxu0 0
        %637 = vmatprep.subr.bf16.mxu0 0
        %638 = vmatpush1.bf16.msra.mxu0 0
        %639 = vmatprep.subr.bf16.mxu0 0
        %640 = vmatpush1.bf16.msra.mxu0 0
        %641 = vmatprep.subr.bf16.mxu0 0
        %642 = vmatpush1.bf16.msra.mxu0 0
        %643 = vmatprep.subr.bf16.mxu0 0
        %644 = vmatpush1.bf16.msra.mxu0 0
        %645 = vmatprep.subr.bf16.mxu0 0
        %646 = vmatpush1.bf16.msra.mxu0 0
        %647 = vmatprep.subr.bf16.mxu0 0
        %648 = vmatpush1.bf16.msra.mxu0 0
        %649 = vmatprep.subr.bf16.mxu0 0
        %650 = vmatpush1.bf16.msra.mxu0 0
        %651 = vmatprep.mubr.bf16.mxu0 0
        %652 = vmatmul.mubr.bf16.gmra.mrb[0].mxu0 %v605
        %v653 = vpop.f32.mrb[0].mxu0
        %v654 = vadd.f32 0.0, %v653
        %v655 = vpop.f32.mrb[0].mxu0
        %v656 = vadd.f32 0.0, %v655
        %v657 = vpop.f32.mrb[0].mxu0
        %v658 = vadd.f32 0.0, %v657
        %v659 = vpop.f32.mrb[0].mxu0
        %v660 = vadd.f32 0.0, %v659
        %661 = vmatprep.mubr.bf16.mxu0 0
        %662 = vmatmul.mubr.bf16.gmra.mrb[0].mxu0 %v608
        %v663 = vpop.f32.mrb[0].mxu0
        %v664 = vadd.f32 0.0, %v663
        %v665 = vpop.f32.mrb[0].mxu0
        %v666 = vadd.f32 0.0, %v665
        %v667 = vpop.f32.mrb[0].mxu0
        %v668 = vadd.f32 0.0, %v667
        %v669 = vpop.f32.mrb[0].mxu0
        %v670 = vadd.f32 0.0, %v669
        %671 = vdwg.mxu0
        %672 = vmatprep.subr.bf16.mxu0 0
        %673 = vmatpush1.bf16.msra.mxu0 %v617
        %674 = vmatprep.subr.bf16.mxu0 0
        %675 = vmatpush1.bf16.msra.mxu0 0
        %676 = vmatprep.subr.bf16.mxu0 0
        %677 = vmatpush1.bf16.msra.mxu0 0
        %678 = vmatprep.subr.bf16.mxu0 0
        %679 = vmatpush1.bf16.msra.mxu0 0
        %680 = vmatprep.subr.bf16.mxu0 0
        %681 = vmatpush1.bf16.msra.mxu0 0
        %682 = vmatprep.subr.bf16.mxu0 0
        %683 = vmatpush1.bf16.msra.mxu0 0
        %684 = vmatprep.subr.bf16.mxu0 0
        %685 = vmatpush1.bf16.msra.mxu0 0
        %686 = vmatprep.subr.bf16.mxu0 0
        %687 = vmatpush1.bf16.msra.mxu0 0
        %688 = vmatprep.subr.bf16.mxu0 0
        %689 = vmatpush1.bf16.msra.mxu0 0
        %690 = vmatprep.subr.bf16.mxu0 0
        %691 = vmatpush1.bf16.msra.mxu0 0
        %692 = vmatprep.subr.bf16.mxu0 0
        %693 = vmatpush1.bf16.msra.mxu0 0
        %694 = vmatprep.subr.bf16.mxu0 0
        %695 = vmatpush1.bf16.msra.mxu0 0
        %696 = vmatprep.subr.bf16.mxu0 0
        %697 = vmatpush1.bf16.msra.mxu0 0
        %698 = vmatprep.subr.bf16.mxu0 0
        %699 = vmatpush1.bf16.msra.mxu0 0
        %700 = vmatprep.subr.bf16.mxu0 0
        %701 = vmatpush1.bf16.msra.mxu0 0
        %702 = vmatprep.subr.bf16.mxu0 0
        %703 = vmatpush1.bf16.msra.mxu0 0
        %704 = vmatprep.mubr.bf16.mxu0 0
        %705 = vmatmul.mubr.bf16.gmra.mrb[0].mxu0 %v605
        %v706 = vpop.f32.mrb[0].mxu0
        %v707 = vadd.f32 0.0, %v706
        %v708 = vpop.f32.mrb[0].mxu0
        %v709 = vpop.f32.mrb[0].mxu0
        %v710 = vadd.f32 0.0, %v709
        %v711 = vpop.f32.mrb[0].mxu0
        %712 = vmatprep.mubr.bf16.mxu0 0
        %713 = vmatmul.mubr.bf16.gmra.mrb[0].mxu0 %v608
        %v714 = vpop.f32.mrb[0].mxu0
        %v715 = vadd.f32 0.0, %v714
        %v716 = vpop.f32.mrb[0].mxu0
        %v717 = vpop.f32.mrb[0].mxu0
        %v718 = vadd.f32 0.0, %v717
        %v719 = vpop.f32.mrb[0].mxu0
        %720 = vdwg.mxu0
        %v721 = vadd.f32 %v513, %v654
        %v722 = vadd.f32 %v515, %v656
        %v723 = vadd.f32 %v566, %v707
        %v724 = vadd.f32 %v517, %v658
        %v725 = vadd.f32 %v519, %v660
        %v726 = vadd.f32 %v569, %v710
        %v727 = vadd.f32 %v523, %v664
        %v728 = vadd.f32 %v525, %v666
        %v729 = vadd.f32 %v574, %v715
        %v730 = vadd.f32 %v527, %v668
        %v731 = vadd.f32 %v529, %v670
        %v732 = vadd.f32 %v577, %v718
        %s733 = scalar_lea.vmem %s1, 48
        %v734 = vld [vmem:[%s733] sm:$0xf]
        %v735 = vld [vmem:[%s733 + $0x4] sm:$0xf]
        %v736 = vld [vmem:[%s733 + $0x8] sm:$0xf]
        %v737 = vld [vmem:[%s733 + $0xc] sm:$0xf]
        %v742 = vunpack.c.l.b16 %v734
        %v743 = vunpack.c.l.b16 %v735
        %v744 = vunpack.c.l.b16 %v736
        %v745 = vunpack.c.l.b16 %v737
        %v746 = vpack.c.b16 %v743, %v742
        %v747 = vpack.c.b16 %v745, %v744
        %748 = vrot.lane.b32.xlu0 %v322, 125
        %v749 = vpop.permute.xlu0 %748
        %750 = vrot.lane.b32.xlu0 %v323, 125
        %v751 = vpop.permute.xlu0 %750
        %752 = vrot.lane.b32.xlu0 %v324, 125
        %v753 = vpop.permute.xlu0 %752
        %vm754 = vcmask 1022976
        %v755 = vsel %vm754, %v749, %v751
        %v756 = vsel %vm754, %v751, %v753
        %v758 = vsel %vm334, %v746, 0
        %v761 = vsel %vm334, %v747, 0
        %v764 = vsel %vm341, %v755, 0
        %v767 = vsel %vm341, %v756, 0
        %v770 = vsel %vm341, %v753, 0
        %772 = vmatprep.subr.bf16.mxu0 %v767
        %773 = vmatpush1.bf16.msra.mxu0 %v764
        %774 = vmatprep.subr.bf16.mxu0 0
        %775 = vmatpush1.bf16.msra.mxu0 0
        %776 = vmatprep.subr.bf16.mxu0 0
        %777 = vmatpush1.bf16.msra.mxu0 0
        %778 = vmatprep.subr.bf16.mxu0 0
        %779 = vmatpush1.bf16.msra.mxu0 0
        %780 = vmatprep.subr.bf16.mxu0 0
        %781 = vmatpush1.bf16.msra.mxu0 0
        %782 = vmatprep.subr.bf16.mxu0 0
        %783 = vmatpush1.bf16.msra.mxu0 0
        %784 = vmatprep.subr.bf16.mxu0 0
        %785 = vmatpush1.bf16.msra.mxu0 0
        %786 = vmatprep.subr.bf16.mxu0 0
        %787 = vmatpush1.bf16.msra.mxu0 0
        %788 = vmatprep.subr.bf16.mxu0 0
        %789 = vmatpush1.bf16.msra.mxu0 0
        %790 = vmatprep.subr.bf16.mxu0 0
        %791 = vmatpush1.bf16.msra.mxu0 0
        %792 = vmatprep.subr.bf16.mxu0 0
        %793 = vmatpush1.bf16.msra.mxu0 0
        %794 = vmatprep.subr.bf16.mxu0 0
        %795 = vmatpush1.bf16.msra.mxu0 0
        %796 = vmatprep.subr.bf16.mxu0 0
        %797 = vmatpush1.bf16.msra.mxu0 0
        %798 = vmatprep.subr.bf16.mxu0 0
        %799 = vmatpush1.bf16.msra.mxu0 0
        %800 = vmatprep.subr.bf16.mxu0 0
        %801 = vmatpush1.bf16.msra.mxu0 0
        %802 = vmatprep.subr.bf16.mxu0 0
        %803 = vmatpush1.bf16.msra.mxu0 0
        %804 = vmatprep.mubr.bf16.mxu0 0
        %805 = vmatmul.mubr.bf16.gmra.mrb[0].mxu0 %v758
        %v806 = vpop.f32.mrb[0].mxu0
        %v807 = vadd.f32 0.0, %v806
        %v808 = vpop.f32.mrb[0].mxu0
        %v809 = vadd.f32 0.0, %v808
        %v810 = vpop.f32.mrb[0].mxu0
        %v811 = vadd.f32 0.0, %v810
        %v812 = vpop.f32.mrb[0].mxu0
        %v813 = vadd.f32 0.0, %v812
        %814 = vmatprep.mubr.bf16.mxu0 0
        %815 = vmatmul.mubr.bf16.gmra.mrb[0].mxu0 %v761
        %v816 = vpop.f32.mrb[0].mxu0
        %v817 = vadd.f32 0.0, %v816
        %v818 = vpop.f32.mrb[0].mxu0
        %v819 = vadd.f32 0.0, %v818
        %v820 = vpop.f32.mrb[0].mxu0
        %v821 = vadd.f32 0.0, %v820
        %v822 = vpop.f32.mrb[0].mxu0
        %v823 = vadd.f32 0.0, %v822
        %824 = vdwg.mxu0
        %825 = vmatprep.subr.bf16.mxu0 0
        %826 = vmatpush1.bf16.msra.mxu0 %v770
        %827 = vmatprep.subr.bf16.mxu0 0
        %828 = vmatpush1.bf16.msra.mxu0 0
        %829 = vmatprep.subr.bf16.mxu0 0
        %830 = vmatpush1.bf16.msra.mxu0 0
        %831 = vmatprep.subr.bf16.mxu0 0
        %832 = vmatpush1.bf16.msra.mxu0 0
        %833 = vmatprep.subr.bf16.mxu0 0
        %834 = vmatpush1.bf16.msra.mxu0 0
        %835 = vmatprep.subr.bf16.mxu0 0
        %836 = vmatpush1.bf16.msra.mxu0 0
        %837 = vmatprep.subr.bf16.mxu0 0
        %838 = vmatpush1.bf16.msra.mxu0 0
        %839 = vmatprep.subr.bf16.mxu0 0
        %840 = vmatpush1.bf16.msra.mxu0 0
        %841 = vmatprep.subr.bf16.mxu0 0
        %842 = vmatpush1.bf16.msra.mxu0 0
        %843 = vmatprep.subr.bf16.mxu0 0
        %844 = vmatpush1.bf16.msra.mxu0 0
        %845 = vmatprep.subr.bf16.mxu0 0
        %846 = vmatpush1.bf16.msra.mxu0 0
        %847 = vmatprep.subr.bf16.mxu0 0
        %848 = vmatpush1.bf16.msra.mxu0 0
        %849 = vmatprep.subr.bf16.mxu0 0
        %850 = vmatpush1.bf16.msra.mxu0 0
        %851 = vmatprep.subr.bf16.mxu0 0
        %852 = vmatpush1.bf16.msra.mxu0 0
        %853 = vmatprep.subr.bf16.mxu0 0
        %854 = vmatpush1.bf16.msra.mxu0 0
        %855 = vmatprep.subr.bf16.mxu0 0
        %856 = vmatpush1.bf16.msra.mxu0 0
        %857 = vmatprep.mubr.bf16.mxu0 0
        %858 = vmatmul.mubr.bf16.gmra.mrb[0].mxu0 %v758
        %v859 = vpop.f32.mrb[0].mxu0
        %v860 = vadd.f32 0.0, %v859
        %v861 = vpop.f32.mrb[0].mxu0
        %v862 = vpop.f32.mrb[0].mxu0
        %v863 = vadd.f32 0.0, %v862
        %v864 = vpop.f32.mrb[0].mxu0
        %865 = vmatprep.mubr.bf16.mxu0 0
        %866 = vmatmul.mubr.bf16.gmra.mrb[0].mxu0 %v761
        %v867 = vpop.f32.mrb[0].mxu0
        %v868 = vadd.f32 0.0, %v867
        %v869 = vpop.f32.mrb[0].mxu0
        %v870 = vpop.f32.mrb[0].mxu0
        %v871 = vadd.f32 0.0, %v870
        %v872 = vpop.f32.mrb[0].mxu0
        %873 = vdwg.mxu0
        %v874 = vadd.f32 %v721, %v807
        %v875 = vadd.f32 %v722, %v809
        %v876 = vadd.f32 %v723, %v860
        %v877 = vadd.f32 %v724, %v811
        %v878 = vadd.f32 %v725, %v813
        %v879 = vadd.f32 %v726, %v863
        %v880 = vadd.f32 %v727, %v817
        %v881 = vadd.f32 %v728, %v819
        %v882 = vadd.f32 %v729, %v868
        %v883 = vadd.f32 %v730, %v821
        %v884 = vadd.f32 %v731, %v823
        %v885 = vadd.f32 %v732, %v871
        %s886 = scalar_lea.vmem %s1, 64
        %v887 = vld [vmem:[%s886] sm:$0xf]
        %v888 = vld [vmem:[%s886 + $0x4] sm:$0xf]
        %v889 = vld [vmem:[%s886 + $0x8] sm:$0xf]
        %v890 = vld [vmem:[%s886 + $0xc] sm:$0xf]
        %v895 = vunpack.c.l.b16 %v887
        %v896 = vunpack.c.l.b16 %v888
        %v897 = vunpack.c.l.b16 %v889
        %v898 = vunpack.c.l.b16 %v890
        %v899 = vpack.c.b16 %v896, %v895
        %v900 = vpack.c.b16 %v898, %v897
        %901 = vrot.lane.b32.xlu0 %v322, 124
        %v902 = vpop.permute.xlu0 %901
        %903 = vrot.lane.b32.xlu0 %v323, 124
        %v904 = vpop.permute.xlu0 %903
        %905 = vrot.lane.b32.xlu0 %v324, 124
        %v906 = vpop.permute.xlu0 %905
        %vm907 = vcmask 1014784
        %v908 = vsel %vm907, %v902, %v904
        %v909 = vsel %vm907, %v904, %v906
        %v911 = vsel %vm334, %v899, 0
        %v914 = vsel %vm334, %v900, 0
        %v917 = vsel %vm341, %v908, 0
        %v920 = vsel %vm341, %v909, 0
        %v923 = vsel %vm341, %v906, 0
        %925 = vmatprep.subr.bf16.mxu0 %v920
        %926 = vmatpush1.bf16.msra.mxu0 %v917
        %927 = vmatprep.subr.bf16.mxu0 0
        %928 = vmatpush1.bf16.msra.mxu0 0
        %929 = vmatprep.subr.bf16.mxu0 0
        %930 = vmatpush1.bf16.msra.mxu0 0
        %931 = vmatprep.subr.bf16.mxu0 0
        %932 = vmatpush1.bf16.msra.mxu0 0
        %933 = vmatprep.subr.bf16.mxu0 0
        %934 = vmatpush1.bf16.msra.mxu0 0
        %935 = vmatprep.subr.bf16.mxu0 0
        %936 = vmatpush1.bf16.msra.mxu0 0
        %937 = vmatprep.subr.bf16.mxu0 0
        %938 = vmatpush1.bf16.msra.mxu0 0
        %939 = vmatprep.subr.bf16.mxu0 0
        %940 = vmatpush1.bf16.msra.mxu0 0
        %941 = vmatprep.subr.bf16.mxu0 0
        %942 = vmatpush1.bf16.msra.mxu0 0
        %943 = vmatprep.subr.bf16.mxu0 0
        %944 = vmatpush1.bf16.msra.mxu0 0
        %945 = vmatprep.subr.bf16.mxu0 0
        %946 = vmatpush1.bf16.msra.mxu0 0
        %947 = vmatprep.subr.bf16.mxu0 0
        %948 = vmatpush1.bf16.msra.mxu0 0
        %949 = vmatprep.subr.bf16.mxu0 0
        %950 = vmatpush1.bf16.msra.mxu0 0
        %951 = vmatprep.subr.bf16.mxu0 0
        %952 = vmatpush1.bf16.msra.mxu0 0
        %953 = vmatprep.subr.bf16.mxu0 0
        %954 = vmatpush1.bf16.msra.mxu0 0
        %955 = vmatprep.subr.bf16.mxu0 0
        %956 = vmatpush1.bf16.msra.mxu0 0
        %957 = vmatprep.mubr.bf16.mxu0 0
        %958 = vmatmul.mubr.bf16.gmra.mrb[0].mxu0 %v911
        %v959 = vpop.f32.mrb[0].mxu0
        %v960 = vadd.f32 0.0, %v959
        %v961 = vpop.f32.mrb[0].mxu0
        %v962 = vadd.f32 0.0, %v961
        %v963 = vpop.f32.mrb[0].mxu0
        %v964 = vadd.f32 0.0, %v963
        %v965 = vpop.f32.mrb[0].mxu0
        %v966 = vadd.f32 0.0, %v965
        %967 = vmatprep.mubr.bf16.mxu0 0
        %968 = vmatmul.mubr.bf16.gmra.mrb[0].mxu0 %v914
        %v969 = vpop.f32.mrb[0].mxu0
        %v970 = vadd.f32 0.0, %v969
        %v971 = vpop.f32.mrb[0].mxu0
        %v972 = vadd.f32 0.0, %v971
        %v973 = vpop.f32.mrb[0].mxu0
        %v974 = vadd.f32 0.0, %v973
        %v975 = vpop.f32.mrb[0].mxu0
        %v976 = vadd.f32 0.0, %v975
        %977 = vdwg.mxu0
        %978 = vmatprep.subr.bf16.mxu0 0
        %979 = vmatpush1.bf16.msra.mxu0 %v923
        %980 = vmatprep.subr.bf16.mxu0 0
        %981 = vmatpush1.bf16.msra.mxu0 0
        %982 = vmatprep.subr.bf16.mxu0 0
        %983 = vmatpush1.bf16.msra.mxu0 0
        %984 = vmatprep.subr.bf16.mxu0 0
        %985 = vmatpush1.bf16.msra.mxu0 0
        %986 = vmatprep.subr.bf16.mxu0 0
        %987 = vmatpush1.bf16.msra.mxu0 0
        %988 = vmatprep.subr.bf16.mxu0 0
        %989 = vmatpush1.bf16.msra.mxu0 0
        %990 = vmatprep.subr.bf16.mxu0 0
        %991 = vmatpush1.bf16.msra.mxu0 0
        %992 = vmatprep.subr.bf16.mxu0 0
        %993 = vmatpush1.bf16.msra.mxu0 0
        %994 = vmatprep.subr.bf16.mxu0 0
        %995 = vmatpush1.bf16.msra.mxu0 0
        %996 = vmatprep.subr.bf16.mxu0 0
        %997 = vmatpush1.bf16.msra.mxu0 0
        %998 = vmatprep.subr.bf16.mxu0 0
        %999 = vmatpush1.bf16.msra.mxu0 0
        %1000 = vmatprep.subr.bf16.mxu0 0
        %1001 = vmatpush1.bf16.msra.mxu0 0
        %1002 = vmatprep.subr.bf16.mxu0 0
        %1003 = vmatpush1.bf16.msra.mxu0 0
        %1004 = vmatprep.subr.bf16.mxu0 0
        %1005 = vmatpush1.bf16.msra.mxu0 0
        %1006 = vmatprep.subr.bf16.mxu0 0
        %1007 = vmatpush1.bf16.msra.mxu0 0
        %1008 = vmatprep.subr.bf16.mxu0 0
        %1009 = vmatpush1.bf16.msra.mxu0 0
        %1010 = vmatprep.mubr.bf16.mxu0 0
        %1011 = vmatmul.mubr.bf16.gmra.mrb[0].mxu0 %v911
        %v1012 = vpop.f32.mrb[0].mxu0
        %v1013 = vadd.f32 0.0, %v1012
        %v1014 = vpop.f32.mrb[0].mxu0
        %v1015 = vpop.f32.mrb[0].mxu0
        %v1016 = vadd.f32 0.0, %v1015
        %v1017 = vpop.f32.mrb[0].mxu0
        %1018 = vmatprep.mubr.bf16.mxu0 0
        %1019 = vmatmul.mubr.bf16.gmra.mrb[0].mxu0 %v914
        %v1020 = vpop.f32.mrb[0].mxu0
        %v1021 = vadd.f32 0.0, %v1020
        %v1022 = vpop.f32.mrb[0].mxu0
        %v1023 = vpop.f32.mrb[0].mxu0
        %v1024 = vadd.f32 0.0, %v1023
        %v1025 = vpop.f32.mrb[0].mxu0
        %1026 = vdwg.mxu0
        %v1027 = vadd.f32 %v874, %v960
        %v1028 = vadd.f32 %v875, %v962
        %v1029 = vadd.f32 %v876, %v1013
        %v1030 = vadd.f32 %v877, %v964
        %v1031 = vadd.f32 %v878, %v966
        %v1032 = vadd.f32 %v879, %v1016
        %v1033 = vadd.f32 %v880, %v970
        %v1034 = vadd.f32 %v881, %v972
        %v1035 = vadd.f32 %v882, %v1021
        %v1036 = vadd.f32 %v883, %v974
        %v1037 = vadd.f32 %v884, %v976
        %v1038 = vadd.f32 %v885, %v1024
        %v1039 = vld [vmem:[%s2] sm:$0xff]
        %v1040 = vld [vmem:[%s2 + $0x8] sm:$0xff]
        %v1041 = vld [vmem:[%s2 + $0x10] sm:$0xff]
        %v1042 = vld [vmem:[%s2 + $0x18] sm:$0xff]
        %1044 = vset.pattern.permute.xlu0 0
        %1045 = vperm.xlu0 %1044, %v1039
        %v1046 = vpop.permute.xlu0 %1045
        %1049 = vset.pattern.permute.xlu0 0
        %1050 = vperm.xlu0 %1049, %v1040
        %v1051 = vpop.permute.xlu0 %1050
        %1054 = vset.pattern.permute.xlu0 0
        %1055 = vperm.xlu0 %1054, %v1041
        %v1056 = vpop.permute.xlu0 %1055
        %1059 = vset.pattern.permute.xlu0 0
        %1060 = vperm.xlu0 %1059, %v1042
        %v1061 = vpop.permute.xlu0 %1060
        %v1063 = vadd.f32 %v1027, %v1046
        %v1064 = vadd.f32 %v1028, %v1046
        %v1065 = vadd.f32 %v1029, %v1046
        %v1066 = vadd.f32 %v1030, %v1051
        %v1067 = vadd.f32 %v1031, %v1051
        %v1068 = vadd.f32 %v1032, %v1051
        %v1069 = vadd.f32 %v1033, %v1056
        %v1070 = vadd.f32 %v1034, %v1056
        %v1071 = vadd.f32 %v1035, %v1056
        %v1072 = vadd.f32 %v1036, %v1061
        %v1073 = vadd.f32 %v1037, %v1061
        %v1074 = vadd.f32 %v1038, %v1061
        %v1075 = vmax.f32 %v1063, 0.0
        %v1076 = vmax.f32 %v1064, 0.0
        %v1077 = vmax.f32 %v1065, 0.0
        %v1078 = vmax.f32 %v1066, 0.0
        %v1079 = vmax.f32 %v1067, 0.0
        %v1080 = vmax.f32 %v1068, 0.0
        %v1081 = vmax.f32 %v1069, 0.0
        %v1082 = vmax.f32 %v1070, 0.0
        %v1083 = vmax.f32 %v1071, 0.0
        %v1084 = vmax.f32 %v1072, 0.0
        %v1085 = vmax.f32 %v1073, 0.0
        %v1086 = vmax.f32 %v1074, 0.0
        %v1087 = vpack.c.bf16 %v1078, %v1075
        %v1088 = vpack.c.bf16 %v1079, %v1076
        %v1089 = vpack.c.bf16 %v1080, %v1077
        %v1090 = vpack.c.bf16 %v1084, %v1081
        %v1091 = vpack.c.bf16 %v1085, %v1082
        %v1092 = vpack.c.bf16 %v1086, %v1083
        %1093 = vrot.lane.b32.xlu0 %v271, 126
        %v1094 = vpop.permute.xlu0 %1093
        %1095 = vrot.lane.b32.xlu0 %v278, 126
        %v1096 = vpop.permute.xlu0 %1095
        %1097 = vrot.lane.b32.xlu0 %v285, 126
        %v1098 = vpop.permute.xlu0 %1097
        %v1099 = vsel %vm601, %v1094, %v1096
        %v1100 = vsel %vm601, %v1096, %v1098
        %v1104 = vmul.bf16 %v1087, %v1099
        %v1105 = vmul.bf16 %v1088, %v1100
        %v1106 = vmul.bf16 %v1089, %v1098
        %v1107 = vmul.bf16 %v1090, %v1099
        %v1108 = vmul.bf16 %v1091, %v1100
        %v1109 = vmul.bf16 %v1092, %v1098
        %v1110 = vld [vmem:[%s3] sm:$0xf]
        %s1111 = scalar_lea.vmem %s3, 4
        %v1112 = vld [vmem:[%s1111] sm:$0xf]
        %1119 = vrot.lane.b32.xlu0 %v1104, 127
        %v1120 = vpop.permute.xlu0 %1119
        %1121 = vrot.lane.b32.xlu0 %v1105, 127
        %v1122 = vpop.permute.xlu0 %1121
        %1123 = vrot.lane.b32.xlu0 %v1106, 127
        %v1124 = vpop.permute.xlu0 %1123
        %1125 = vrot.lane.b32.xlu0 %v1107, 127
        %v1126 = vpop.permute.xlu0 %1125
        %1127 = vrot.lane.b32.xlu0 %v1108, 127
        %v1128 = vpop.permute.xlu0 %1127
        %1129 = vrot.lane.b32.xlu0 %v1109, 127
        %v1130 = vpop.permute.xlu0 %1129
        %v1131 = vsel %vm331, %v1120, %v1122
        %v1132 = vsel %vm331, %v1122, %v1124
        %v1133 = vsel %vm331, %v1126, %v1128
        %v1134 = vsel %vm331, %v1128, %v1130
        %vm1139 = vcmask 261120
        %v1141 = vsel %vm1139, %v1112, 0
        %1143 = vmatprep.subr.bf16.mxu0 %v1132
        %1144 = vmatpush1.bf16.msra.mxu0 %v1131
        %1145 = vmatprep.subr.bf16.mxu0 %v1134
        %1146 = vmatpush1.bf16.msra.mxu0 %v1133
        %1147 = vmatprep.subr.bf16.mxu0 0
        %1148 = vmatpush1.bf16.msra.mxu0 0
        %1149 = vmatprep.subr.bf16.mxu0 0
        %1150 = vmatpush1.bf16.msra.mxu0 0
        %1151 = vmatprep.subr.bf16.mxu0 0
        %1152 = vmatpush1.bf16.msra.mxu0 0
        %1153 = vmatprep.subr.bf16.mxu0 0
        %1154 = vmatpush1.bf16.msra.mxu0 0
        %1155 = vmatprep.subr.bf16.mxu0 0
        %1156 = vmatpush1.bf16.msra.mxu0 0
        %1157 = vmatprep.subr.bf16.mxu0 0
        %1158 = vmatpush1.bf16.msra.mxu0 0
        %1159 = vmatprep.subr.bf16.mxu0 0
        %1160 = vmatpush1.bf16.msra.mxu0 0
        %1161 = vmatprep.subr.bf16.mxu0 0
        %1162 = vmatpush1.bf16.msra.mxu0 0
        %1163 = vmatprep.subr.bf16.mxu0 0
        %1164 = vmatpush1.bf16.msra.mxu0 0
        %1165 = vmatprep.subr.bf16.mxu0 0
        %1166 = vmatpush1.bf16.msra.mxu0 0
        %1167 = vmatprep.subr.bf16.mxu0 0
        %1168 = vmatpush1.bf16.msra.mxu0 0
        %1169 = vmatprep.subr.bf16.mxu0 0
        %1170 = vmatpush1.bf16.msra.mxu0 0
        %1171 = vmatprep.subr.bf16.mxu0 0
        %1172 = vmatpush1.bf16.msra.mxu0 0
        %1173 = vmatprep.subr.bf16.mxu0 0
        %1174 = vmatpush1.bf16.msra.mxu0 0
        %1175 = vmatprep.mubr.bf16.mxu0 0
        %1176 = vmatmul.mubr.bf16.gmra.mrb[0].mxu0 %v1141
        %v1177 = vpop.f32.mrb[0].mxu0
        %v1178 = vadd.f32 0.0, %v1177
        %v1179 = vpop.f32.mrb[0].mxu0
        %v1180 = vadd.f32 0.0, %v1179
        %v1181 = vpop.f32.mrb[0].mxu0
        %v1182 = vpop.f32.mrb[0].mxu0
        %1183 = vdwg.mxu0
        %v1185 = vsel %vm1139, %v1110, 0
        %1187 = vmatprep.subr.bf16.mxu0 %v1105
        %1188 = vmatpush1.bf16.msra.mxu0 %v1104
        %1189 = vmatprep.subr.bf16.mxu0 %v1108
        %1190 = vmatpush1.bf16.msra.mxu0 %v1107
        %1191 = vmatprep.subr.bf16.mxu0 0
        %1192 = vmatpush1.bf16.msra.mxu0 0
        %1193 = vmatprep.subr.bf16.mxu0 0
        %1194 = vmatpush1.bf16.msra.mxu0 0
        %1195 = vmatprep.subr.bf16.mxu0 0
        %1196 = vmatpush1.bf16.msra.mxu0 0
        %1197 = vmatprep.subr.bf16.mxu0 0
        %1198 = vmatpush1.bf16.msra.mxu0 0
        %1199 = vmatprep.subr.bf16.mxu0 0
        %1200 = vmatpush1.bf16.msra.mxu0 0
        %1201 = vmatprep.subr.bf16.mxu0 0
        %1202 = vmatpush1.bf16.msra.mxu0 0
        %1203 = vmatprep.subr.bf16.mxu0 0
        %1204 = vmatpush1.bf16.msra.mxu0 0
        %1205 = vmatprep.subr.bf16.mxu0 0
        %1206 = vmatpush1.bf16.msra.mxu0 0
        %1207 = vmatprep.subr.bf16.mxu0 0
        %1208 = vmatpush1.bf16.msra.mxu0 0
        %1209 = vmatprep.subr.bf16.mxu0 0
        %1210 = vmatpush1.bf16.msra.mxu0 0
        %1211 = vmatprep.subr.bf16.mxu0 0
        %1212 = vmatpush1.bf16.msra.mxu0 0
        %1213 = vmatprep.subr.bf16.mxu0 0
        %1214 = vmatpush1.bf16.msra.mxu0 0
        %1215 = vmatprep.subr.bf16.mxu0 0
        %1216 = vmatpush1.bf16.msra.mxu0 0
        %1217 = vmatprep.subr.bf16.mxu0 0
        %1218 = vmatpush1.bf16.msra.mxu0 0
        %1219 = vmatprep.mubr.bf16.mxu0 0
        %1220 = vmatmul.mubr.bf16.gmra.mrb[0].mxu0 %v1185
        %v1221 = vpop.f32.mrb[0].mxu0
        %v1222 = vadd.f32 %v1178, %v1221
        %v1223 = vpop.f32.mrb[0].mxu0
        %v1224 = vadd.f32 %v1180, %v1223
        %v1225 = vpop.f32.mrb[0].mxu0
        %v1226 = vpop.f32.mrb[0].mxu0
        %1227 = vdwg.mxu0
        %s1228 = scalar_lea.vmem %s3, 8
        %v1229 = vld [vmem:[%s1228] sm:$0xf]
        %1230 = vrot.lane.b32.xlu0 %v1104, 126
        %v1231 = vpop.permute.xlu0 %1230
        %1232 = vrot.lane.b32.xlu0 %v1105, 126
        %v1233 = vpop.permute.xlu0 %1232
        %1234 = vrot.lane.b32.xlu0 %v1106, 126
        %v1235 = vpop.permute.xlu0 %1234
        %1236 = vrot.lane.b32.xlu0 %v1107, 126
        %v1237 = vpop.permute.xlu0 %1236
        %1238 = vrot.lane.b32.xlu0 %v1108, 126
        %v1239 = vpop.permute.xlu0 %1238
        %1240 = vrot.lane.b32.xlu0 %v1109, 126
        %v1241 = vpop.permute.xlu0 %1240
        %v1242 = vsel %vm601, %v1231, %v1233
        %v1243 = vsel %vm601, %v1233, %v1235
        %v1244 = vsel %vm601, %v1237, %v1239
        %v1245 = vsel %vm601, %v1239, %v1241
        %v1251 = vsel %vm1139, %v1229, 0
        %1253 = vmatprep.subr.bf16.mxu0 %v1243
        %1254 = vmatpush1.bf16.msra.mxu0 %v1242
        %1255 = vmatprep.subr.bf16.mxu0 %v1245
        %1256 = vmatpush1.bf16.msra.mxu0 %v1244
        %1257 = vmatprep.subr.bf16.mxu0 0
        %1258 = vmatpush1.bf16.msra.mxu0 0
        %1259 = vmatprep.subr.bf16.mxu0 0
        %1260 = vmatpush1.bf16.msra.mxu0 0
        %1261 = vmatprep.subr.bf16.mxu0 0
        %1262 = vmatpush1.bf16.msra.mxu0 0
        %1263 = vmatprep.subr.bf16.mxu0 0
        %1264 = vmatpush1.bf16.msra.mxu0 0
        %1265 = vmatprep.subr.bf16.mxu0 0
        %1266 = vmatpush1.bf16.msra.mxu0 0
        %1267 = vmatprep.subr.bf16.mxu0 0
        %1268 = vmatpush1.bf16.msra.mxu0 0
        %1269 = vmatprep.subr.bf16.mxu0 0
        %1270 = vmatpush1.bf16.msra.mxu0 0
        %1271 = vmatprep.subr.bf16.mxu0 0
        %1272 = vmatpush1.bf16.msra.mxu0 0
        %1273 = vmatprep.subr.bf16.mxu0 0
        %1274 = vmatpush1.bf16.msra.mxu0 0
        %1275 = vmatprep.subr.bf16.mxu0 0
        %1276 = vmatpush1.bf16.msra.mxu0 0
        %1277 = vmatprep.subr.bf16.mxu0 0
        %1278 = vmatpush1.bf16.msra.mxu0 0
        %1279 = vmatprep.subr.bf16.mxu0 0
        %1280 = vmatpush1.bf16.msra.mxu0 0
        %1281 = vmatprep.subr.bf16.mxu0 0
        %1282 = vmatpush1.bf16.msra.mxu0 0
        %1283 = vmatprep.subr.bf16.mxu0 0
        %1284 = vmatpush1.bf16.msra.mxu0 0
        %1285 = vmatprep.mubr.bf16.mxu0 0
        %1286 = vmatmul.mubr.bf16.gmra.mrb[0].mxu0 %v1251
        %v1287 = vpop.f32.mrb[0].mxu0
        %v1288 = vadd.f32 0.0, %v1287
        %v1289 = vpop.f32.mrb[0].mxu0
        %v1290 = vadd.f32 0.0, %v1289
        %v1291 = vpop.f32.mrb[0].mxu0
        %v1292 = vpop.f32.mrb[0].mxu0
        %1293 = vdwg.mxu0
        %v1294 = vadd.f32 %v1222, %v1288
        %v1295 = vadd.f32 %v1224, %v1290
        %s1296 = scalar_lea.vmem %s3, 12
        %v1297 = vld [vmem:[%s1296] sm:$0xf]
        %1298 = vrot.lane.b32.xlu0 %v1104, 125
        %v1299 = vpop.permute.xlu0 %1298
        %1300 = vrot.lane.b32.xlu0 %v1105, 125
        %v1301 = vpop.permute.xlu0 %1300
        %1302 = vrot.lane.b32.xlu0 %v1106, 125
        %v1303 = vpop.permute.xlu0 %1302
        %1304 = vrot.lane.b32.xlu0 %v1107, 125
        %v1305 = vpop.permute.xlu0 %1304
        %1306 = vrot.lane.b32.xlu0 %v1108, 125
        %v1307 = vpop.permute.xlu0 %1306
        %1308 = vrot.lane.b32.xlu0 %v1109, 125
        %v1309 = vpop.permute.xlu0 %1308
        %v1310 = vsel %vm754, %v1299, %v1301
        %v1311 = vsel %vm754, %v1301, %v1303
        %v1312 = vsel %vm754, %v1305, %v1307
        %v1313 = vsel %vm754, %v1307, %v1309
        %v1319 = vsel %vm1139, %v1297, 0
        %1321 = vmatprep.subr.bf16.mxu0 %v1311
        %1322 = vmatpush1.bf16.msra.mxu0 %v1310
        %1323 = vmatprep.subr.bf16.mxu0 %v1313
        %1324 = vmatpush1.bf16.msra.mxu0 %v1312
        %1325 = vmatprep.subr.bf16.mxu0 0
        %1326 = vmatpush1.bf16.msra.mxu0 0
        %1327 = vmatprep.subr.bf16.mxu0 0
        %1328 = vmatpush1.bf16.msra.mxu0 0
        %1329 = vmatprep.subr.bf16.mxu0 0
        %1330 = vmatpush1.bf16.msra.mxu0 0
        %1331 = vmatprep.subr.bf16.mxu0 0
        %1332 = vmatpush1.bf16.msra.mxu0 0
        %1333 = vmatprep.subr.bf16.mxu0 0
        %1334 = vmatpush1.bf16.msra.mxu0 0
        %1335 = vmatprep.subr.bf16.mxu0 0
        %1336 = vmatpush1.bf16.msra.mxu0 0
        %1337 = vmatprep.subr.bf16.mxu0 0
        %1338 = vmatpush1.bf16.msra.mxu0 0
        %1339 = vmatprep.subr.bf16.mxu0 0
        %1340 = vmatpush1.bf16.msra.mxu0 0
        %1341 = vmatprep.subr.bf16.mxu0 0
        %1342 = vmatpush1.bf16.msra.mxu0 0
        %1343 = vmatprep.subr.bf16.mxu0 0
        %1344 = vmatpush1.bf16.msra.mxu0 0
        %1345 = vmatprep.subr.bf16.mxu0 0
        %1346 = vmatpush1.bf16.msra.mxu0 0
        %1347 = vmatprep.subr.bf16.mxu0 0
        %1348 = vmatpush1.bf16.msra.mxu0 0
        %1349 = vmatprep.subr.bf16.mxu0 0
        %1350 = vmatpush1.bf16.msra.mxu0 0
        %1351 = vmatprep.subr.bf16.mxu0 0
        %1352 = vmatpush1.bf16.msra.mxu0 0
        %1353 = vmatprep.mubr.bf16.mxu0 0
        %1354 = vmatmul.mubr.bf16.gmra.mrb[0].mxu0 %v1319
        %v1355 = vpop.f32.mrb[0].mxu0
        %v1356 = vadd.f32 0.0, %v1355
        %v1357 = vpop.f32.mrb[0].mxu0
        %v1358 = vadd.f32 0.0, %v1357
        %v1359 = vpop.f32.mrb[0].mxu0
        %v1360 = vpop.f32.mrb[0].mxu0
        %1361 = vdwg.mxu0
        %v1362 = vadd.f32 %v1294, %v1356
        %v1363 = vadd.f32 %v1295, %v1358
        %s1364 = scalar_lea.vmem %s3, 16
        %v1365 = vld [vmem:[%s1364] sm:$0xf]
        %1366 = vrot.lane.b32.xlu0 %v1104, 124
        %v1367 = vpop.permute.xlu0 %1366
        %1368 = vrot.lane.b32.xlu0 %v1105, 124
        %v1369 = vpop.permute.xlu0 %1368
        %1370 = vrot.lane.b32.xlu0 %v1106, 124
        %v1371 = vpop.permute.xlu0 %1370
        %1372 = vrot.lane.b32.xlu0 %v1107, 124
        %v1373 = vpop.permute.xlu0 %1372
        %1374 = vrot.lane.b32.xlu0 %v1108, 124
        %v1375 = vpop.permute.xlu0 %1374
        %1376 = vrot.lane.b32.xlu0 %v1109, 124
        %v1377 = vpop.permute.xlu0 %1376
        %v1378 = vsel %vm907, %v1367, %v1369
        %v1379 = vsel %vm907, %v1369, %v1371
        %v1380 = vsel %vm907, %v1373, %v1375
        %v1381 = vsel %vm907, %v1375, %v1377
        %v1387 = vsel %vm1139, %v1365, 0
        %1389 = vmatprep.subr.bf16.mxu0 %v1379
        %1390 = vmatpush1.bf16.msra.mxu0 %v1378
        %1391 = vmatprep.subr.bf16.mxu0 %v1381
        %1392 = vmatpush1.bf16.msra.mxu0 %v1380
        %1393 = vmatprep.subr.bf16.mxu0 0
        %1394 = vmatpush1.bf16.msra.mxu0 0
        %1395 = vmatprep.subr.bf16.mxu0 0
        %1396 = vmatpush1.bf16.msra.mxu0 0
        %1397 = vmatprep.subr.bf16.mxu0 0
        %1398 = vmatpush1.bf16.msra.mxu0 0
        %1399 = vmatprep.subr.bf16.mxu0 0
        %1400 = vmatpush1.bf16.msra.mxu0 0
        %1401 = vmatprep.subr.bf16.mxu0 0
        %1402 = vmatpush1.bf16.msra.mxu0 0
        %1403 = vmatprep.subr.bf16.mxu0 0
        %1404 = vmatpush1.bf16.msra.mxu0 0
        %1405 = vmatprep.subr.bf16.mxu0 0
        %1406 = vmatpush1.bf16.msra.mxu0 0
        %1407 = vmatprep.subr.bf16.mxu0 0
        %1408 = vmatpush1.bf16.msra.mxu0 0
        %1409 = vmatprep.subr.bf16.mxu0 0
        %1410 = vmatpush1.bf16.msra.mxu0 0
        %1411 = vmatprep.subr.bf16.mxu0 0
        %1412 = vmatpush1.bf16.msra.mxu0 0
        %1413 = vmatprep.subr.bf16.mxu0 0
        %1414 = vmatpush1.bf16.msra.mxu0 0
        %1415 = vmatprep.subr.bf16.mxu0 0
        %1416 = vmatpush1.bf16.msra.mxu0 0
        %1417 = vmatprep.subr.bf16.mxu0 0
        %1418 = vmatpush1.bf16.msra.mxu0 0
        %1419 = vmatprep.subr.bf16.mxu0 0
        %1420 = vmatpush1.bf16.msra.mxu0 0
        %1421 = vmatprep.mubr.bf16.mxu0 0
        %1422 = vmatmul.mubr.bf16.gmra.mrb[0].mxu0 %v1387
        %v1423 = vpop.f32.mrb[0].mxu0
        %v1424 = vadd.f32 0.0, %v1423
        %v1425 = vpop.f32.mrb[0].mxu0
        %v1426 = vadd.f32 0.0, %v1425
        %v1427 = vpop.f32.mrb[0].mxu0
        %v1428 = vpop.f32.mrb[0].mxu0
        %1429 = vdwg.mxu0
        %v1430 = vadd.f32 %v1362, %v1424
        %v1431 = vadd.f32 %v1363, %v1426
        %v1432 = vld [vmem:[%s4] sm:$0xff]
        %1434 = vset.pattern.permute.xlu0 0
        %1435 = vperm.xlu0 %1434, %v1432
        %v1436 = vpop.permute.xlu0 %1435
        %v1438 = vadd.f32 %v1430, %v1436
        %v1439 = vadd.f32 %v1431, %v1436
        %v1440 = vunpack.c.l.bf16 %v255
        %v1441 = vunpack.c.h.bf16 %v255
        %v1442 = vunpack.c.l.bf16 %v256
        %v1443 = vlaneseq
        %v1444 = vshrl.u32 %v1443, 7
        %v1445 = vsub.s32 0, %v1444
        %v1446 = vrot.slane %v1440, %v1445
        %v1447 = vlaneseq
        %v1448 = vshrl.u32 %v1447, 7
        %v1449 = vsub.s32 0, %v1448
        %v1450 = vrot.slane %v1441, %v1449
        %v1451 = vlaneseq
        %v1452 = vshrl.u32 %v1451, 7
        %v1453 = vsub.s32 0, %v1452
        %v1454 = vrot.slane %v1442, %v1453
        %1458 = vrot.lane.b32.xlu0 %v1446, 124
        %v1459 = vpop.permute.xlu0 %1458
        %1460 = vrot.lane.b32.xlu0 %v1450, 124
        %v1461 = vpop.permute.xlu0 %1460
        %1462 = vrot.lane.b32.xlu0 %v1454, 124
        %v1463 = vpop.permute.xlu0 %1462
        %vm1464 = vcmask 1014784
        %v1465 = vsel %vm1464, %v1459, %v1461
        %v1466 = vsel %vm1464, %v1461, %v1463
        %v1469 = vmul.f32 %v1438, %v1465
        %v1470 = vmul.f32 %v1439, %v1466
        %1471 = vst [vmem:[%s241] sm:$0xff] %v1469
        %1472 = vst [vmem:[%s241 + $0x8] sm:$0xff] %v1470
        %s1473 = sand.u32 %s153, 1
        %s1474 = scalar_lea.sflag [#allocation3], %s1473
        %s1475 = sand.u32 %s153, 1
        %s1476 = smul.addr %s1475, 16
        %s1477 = scalar_lea.vmem [#allocation2], %s1476
        // Predicated region
        $region41: #{tpu_custom_call.1} parent=39 // pred_check
          %p1478 = pneg %p163
        $region42: #{tpu_custom_call.1} parent=39 // pred_check_branch
          %1480 = sbr.rel (%p1478) target = $region44
        $region43: #{tpu_custom_call.1} parent=39 // pred_region
          %s1481 = smul.u32 2, %s23
          %s1483 = ssub.s32 256, 256
          %1484 = vsyncadd %s1474, %s1483
          %s1485 = smul.addr %s24, 2
          %s1486 = sadd.s32 %s1481, %s1485
          %s1487 = smul.addr %s1486, 128
          %s1488 = scalar_lea.hbm %s5, %s1487
          %s1490 = sshll.u32 %s1477, 4
          %s1491 = int_to_ptr.vmem [resolvable:$true] %s1490
          %1493 = dma.vmem_to_hbm [thread:$0]  %s1491, 256, %s1488, %s1474
        $region44: #{tpu_custom_call.1} parent=39 // pred_fallthru
          _
      $region40: #{tpu_custom_call.1} parent=5 // pred_fallthru
        _
      %p1494 = scmp.le.s32.totalorder 2, %s14
      // Predicated region
      $region45: #{tpu_custom_call.1} parent=5 // pred_check
        %p1495 = pneg %p1494
      $region46: #{tpu_custom_call.1} parent=5 // pred_check_branch
        %1497 = sbr.rel (%p1495) target = $region48
      $region47: #{tpu_custom_call.1} parent=5 // pred_region
        %s1498 = ssub.s32 %s14, 2
        // Predicated region
        $region49: #{tpu_custom_call.1} parent=47 // pred_check
          %p1499 = pneg %p169
        $region50: #{tpu_custom_call.1} parent=47 // pred_check_branch
          %1501 = sbr.rel (%p1499) target = $region52
        $region51: #{tpu_custom_call.1} parent=47 // pred_region
          %s1502 = sand.u32 %s154, 1
          %s1503 = scalar_lea.sflag [#allocation3], %s1502
          %s1504 = sand.u32 %s154, 1
          %s1505 = smul.addr %s1504, 16
          %s1506 = scalar_lea.vmem [#allocation2], %s1505
          %1507 = dma.done %s1503, 256
        $region52: #{tpu_custom_call.1} parent=47 // pred_fallthru
          _
      $region48: #{tpu_custom_call.1} parent=5 // pred_fallthru
        _
    $region6: #{tpu_custom_call.1} parent=1 // loop_footer
      %s18 = sadd.s32 1, %s14
    $region7: #{tpu_custom_call.1} parent=1 // loop_footer_branch
      %13 = sbr.rel target = $region3
    $region8: #{tpu_custom_call.1} parent=1 // loop_exit
      _
    %1508 = vsyncpa [#allocation3], 1
    %s1509 = scalar_lea.sflag [#allocation3], 1
    %1510 = vsyncpa %s1509, 1

</llo_original>
